<compile_context>
chip_gen: v7x
topology: tpu7x:2x2x1
jax: 0.10.0
libtpu: 0.0.40
codegen_flags: <defaults>
</compile_context>

<pallas_src>
import functools

import jax
import jax.numpy as jnp
from jax import lax
from jax.experimental import pallas as pl
from jax.experimental.pallas import tpu as pltpu


def _round_up(x, m):
    return (x + m - 1) // m * m


# ---------------------------------------------------------------------------
# Kernel: one grid step == one chunk of T_CHUNK LSTM timesteps.
# ---------------------------------------------------------------------------
def _lstm_decoder_kernel(emb_ref, wx_ref, wh_ref, b_ref, wo_ref, bo_ref,
                         out_ref, h_ref, c_ref, xg_ref, hs_ref,
                         *, t_chunk, bp, hp):
    chunk = pl.program_id(0)

    @pl.when(chunk == 0)
    def _():
        h_ref[...] = jnp.zeros_like(h_ref)
        c_ref[...] = jnp.zeros_like(c_ref)

    # ---- time-parallel input projection: one big MXU matmul per chunk ----
    x = emb_ref[0]                                       # (T_CHUNK*BP, D) bf16
    xg_ref[...] = (jnp.dot(x, wx_ref[...],
                           preferred_element_type=jnp.float32)
                   + b_ref[...])                         # bias hoisted out of the loop

    wh = wh_ref[...]                                     # (HP, 4*HP) bf16, hoisted

    # ---- sequential recurrence over the chunk (h/c live in vregs) ----
    def step(t, carry):
        h, c = carry                                     # (BP, HP) f32
        row = pl.multiple_of(t * bp, bp)
        gates = xg_ref[pl.ds(row, bp), :] + jnp.dot(
            h.astype(jnp.bfloat16), wh, preferred_element_type=jnp.float32)
        # Gate order i, f, g, o; each gate is a lane-aligned 128-wide block.
        i_g = jax.nn.sigmoid(gates[:, 0 * hp:1 * hp])
        f_g = jax.nn.sigmoid(gates[:, 1 * hp:2 * hp])
        g_g = jnp.tanh(gates[:, 2 * hp:3 * hp])
        o_g = jax.nn.sigmoid(gates[:, 3 * hp:4 * hp])
        c_new = f_g * c + i_g * g_g                      # f32 state math
        h_new = o_g * jnp.tanh(c_new)
        hs_ref[pl.ds(row, bp), :] = h_new                # flat store, no reshape later
        return h_new, c_new

    h_fin, c_fin = lax.fori_loop(0, t_chunk, step,
                                 (h_ref[...], c_ref[...]), unroll=True)
    h_ref[...] = h_fin
    c_ref[...] = c_fin

    # ---- chunk-level vocab projection: one lane-dense matmul + store ----
    hs = hs_ref[...].astype(jnp.bfloat16)                # (T_CHUNK*BP, HP)
    out_ref[0] = jnp.dot(hs, wo_ref[...],
                         preferred_element_type=jnp.float32) + bo_ref[...]


# ---------------------------------------------------------------------------
# Wrapper: pads / re-lays weights & activations and launches the kernel.
# ---------------------------------------------------------------------------
def lstm_decoder_pallas(emb, w_ih, w_hh, b_ih, b_hh, w_out, b_out, *,
                        t_chunk=8):
    """emb: (T, B, D) float. Returns (T, B, V) f32 logits (LSTM -> Linear)."""
    T, B, D = emb.shape
    H = w_ih.shape[0] // 4
    V = w_out.shape[0]

    HP = _round_up(H, 128)       # lane-align hidden (per-gate 128-lane blocks)
    VP = _round_up(V, 128)       # lane-dense output store
    BP = _round_up(B, 8)         # sublane-align batch
    TP = _round_up(T, t_chunk)
    n_chunks = TP // t_chunk

    f32 = jnp.float32
    bf16 = jnp.bfloat16

    # Re-lay LSTM weights: transpose and pad each gate block (i,f,g,o) so it
    # occupies its own lane-aligned HP-wide slab of the 4*HP gate axis.
    def relay_gates(w, rows, rows_pad):                  # w: (4H, rows)
        wt = jnp.asarray(w, f32).T                       # (rows, 4H)
        out = jnp.zeros((rows_pad, 4 * HP), f32)
        for g in range(4):
            out = out.at[:rows, g * HP:g * HP + H].set(wt[:, g * H:(g + 1) * H])
        return out

    wx = relay_gates(w_ih, D, D).astype(bf16)            # (D, 4*HP)   bf16
    wh = relay_gates(w_hh, H, HP).astype(bf16)           # (HP, 4*HP)  bf16

    bsum = jnp.asarray(b_ih + b_hh, f32)
    bias = jnp.zeros((1, 4 * HP), f32)
    for g in range(4):
        bias = bias.at[0, g * HP:g * HP + H].set(bsum[g * H:(g + 1) * H])

    wo = jnp.zeros((HP, VP), f32).at[:H, :V].set(jnp.asarray(w_out, f32).T)
    wo = wo.astype(bf16)                                 # (HP, VP) bf16
    bo = jnp.zeros((1, VP), f32).at[0, :V].set(jnp.asarray(b_out, f32))

    # Pad activations (time -> chunk multiple, batch -> sublane multiple) and
    # pre-fold to (chunk, T_CHUNK*BP, D) so the kernel inputs/outputs need no
    # in-kernel reshapes.
    emb_p = jnp.zeros((TP, BP, D), bf16).at[:T, :B, :].set(emb.astype(bf16))
    emb_p = emb_p.reshape(n_chunks, t_chunk * BP, D)

    kernel = functools.partial(_lstm_decoder_kernel,
                               t_chunk=t_chunk, bp=BP, hp=HP)

    out = pl.pallas_call(
        kernel,
        out_shape=jax.ShapeDtypeStruct((n_chunks, t_chunk * BP, VP), f32),
        grid_spec=pltpu.PrefetchScalarGridSpec(
            num_scalar_prefetch=0,
            grid=(n_chunks,),
            in_specs=[
                pl.BlockSpec((1, t_chunk * BP, D), lambda c: (c, 0, 0)),  # emb chunk
                # TODO(synk): at realistic H/V sizes, mark the invariant weight
                # specs pipeline_mode=pl.Buffered(1) and tile W_out^T over V
                # (extra 'parallel' grid axis) to fit v7x's 64 MiB VMEM.
                pl.BlockSpec((D, 4 * HP), lambda c: (0, 0)),      # W_ih^T (re-laid)
                pl.BlockSpec((HP, 4 * HP), lambda c: (0, 0)),     # W_hh^T (re-laid)
                pl.BlockSpec((1, 4 * HP), lambda c: (0, 0)),      # b_ih + b_hh
                pl.BlockSpec((HP, VP), lambda c: (0, 0)),         # W_out^T
                pl.BlockSpec((1, VP), lambda c: (0, 0)),          # b_out
            ],
            out_specs=pl.BlockSpec((1, t_chunk * BP, VP), lambda c: (c, 0, 0)),
            scratch_shapes=[
                pltpu.VMEM((BP, HP), f32),                 # h (persists across chunks)
                pltpu.VMEM((BP, HP), f32),                 # c (persists across chunks)
                pltpu.VMEM((t_chunk * BP, 4 * HP), f32),   # chunk gate pre-activations
                pltpu.VMEM((t_chunk * BP, HP), f32),       # chunk h history (flat)
            ],
        ),
        compiler_params=pltpu.CompilerParams(
            dimension_semantics=("arbitrary",)),           # sequential recurrence
    )(emb_p, wx, wh, bias, wo, bo)

    out = out.reshape(TP, BP, VP)
    return out[:T, :B, :V]


# ---------------------------------------------------------------------------
# Decoder forward (matches the PyTorch module semantics).
# ---------------------------------------------------------------------------
def decoder_forward(x, params, D):
    """If x already carries the feature dim D it is used directly as the
    (unbatched, time-major) embedded input, like the PyTorch module's
    `x.shape[1] == self.D` branch; otherwise x holds token indices."""
    if x.ndim == 2 and jnp.issubdtype(x.dtype, jnp.floating) and x.shape[1] == D:
        emb = x[:, None, :].astype(jnp.float32)           # (T, 1, D)
        out = lstm_decoder_pallas(emb, params["w_ih"], params["w_hh"],
                                  params["b_ih"], params["b_hh"],
                                  params["w_out"], params["b_out"])
        return out[:, 0, :]                               # (T, V)
    emb = params["embed"][x]                              # embedding gather (plain JAX)
    return lstm_decoder_pallas(emb, params["w_ih"], params["w_hh"],
                               params["b_ih"], params["b_hh"],
                               params["w_out"], params["b_out"])


# Pure-JAX f32 reference (PyTorch LSTM semantics, gate order i,f,g,o).
def decoder_reference(emb, params):
    w_ih, w_hh = params["w_ih"], params["w_hh"]
    b = params["b_ih"] + params["b_hh"]
    H = w_hh.shape[1]
    B = emb.shape[1]

    def step(carry, x_t):
        h, c = carry
        gates = x_t @ w_ih.T + h @ w_hh.T + b
        i = jax.nn.sigmoid(gates[:, 0 * H:1 * H])
        f = jax.nn.sigmoid(gates[:, 1 * H:2 * H])
        g = jnp.tanh(gates[:, 2 * H:3 * H])
        o = jax.nn.sigmoid(gates[:, 3 * H:4 * H])
        c_new = f * c + i * g
        h_new = o * jnp.tanh(c_new)
        return (h_new, c_new), h_new

    init = (jnp.zeros((B, H), jnp.float32), jnp.zeros((B, H), jnp.float32))
    _, hs = lax.scan(step, init, emb)                     # (T, B, H)
    return hs @ params["w_out"].T + params["b_out"]


if __name__ == "__main__":
    V, D, H = 32, 16, 32
    T, B = 12, 4                                          # T not a chunk multiple on purpose

    key = jax.random.PRNGKey(0)
    ks = jax.random.split(key, 9)
    s = 1.0 / jnp.sqrt(H)
    params = {
        "embed": jax.random.normal(ks[0], (V, D), jnp.float32) * 0.1,
        "w_ih": jax.random.uniform(ks[1], (4 * H, D), jnp.float32, -s, s),
        "w_hh": jax.random.uniform(ks[2], (4 * H, H), jnp.float32, -s, s),
        "b_ih": jax.random.uniform(ks[3], (4 * H,), jnp.float32, -s, s),
        "b_hh": jax.random.uniform(ks[4], (4 * H,), jnp.float32, -s, s),
        "w_out": jax.random.uniform(ks[5], (V, H), jnp.float32, -s, s),
        "b_out": jax.random.uniform(ks[6], (V,), jnp.float32, -s, s),
    }

    # Token-index path: (T, B) int32 -> embed -> LSTM -> Linear.
    x_idx = jax.random.randint(ks[7], (T, B), 0, V, dtype=jnp.int32)
    out = jax.block_until_ready(decoder_forward(x_idx, params, D))
    assert out.shape == (T, B, V), out.shape
    ref = decoder_reference(params["embed"][x_idx], params)
    err = float(jnp.max(jnp.abs(out - ref)))
    assert err < 3e-2, f"token path max abs err {err}"    # bf16-weight tolerance

    # Float passthrough path: (T, D) -> LSTM -> Linear (unbatched).
    x_f = 0.1 * jax.random.normal(ks[8], (T, D), jnp.float32)
    out2 = jax.block_until_ready(decoder_forward(x_f, params, D))
    assert out2.shape == (T, V), out2.shape
    ref2 = decoder_reference(x_f[:, None, :], params)[:, 0, :]
    err2 = float(jnp.max(jnp.abs(out2 - ref2)))
    assert err2 < 3e-2, f"passthrough path max abs err {err2}"

    print("KERNEL_OK")
</pallas_src>

<mosaic_0001>
module attributes {stable_mosaic.version = 11 : i64} {
  func.func @_lstm_decoder_kernel(%arg0: i32, %arg1: memref<1x64x16xbf16, #tpu.memory_space<vmem>>, %arg2: memref<16x512xbf16, #tpu.memory_space<vmem>>, %arg3: memref<128x512xbf16, #tpu.memory_space<vmem>>, %arg4: memref<1x512xf32, #tpu.memory_space<vmem>>, %arg5: memref<128x128xbf16, #tpu.memory_space<vmem>>, %arg6: memref<1x128xf32, #tpu.memory_space<vmem>>, %arg7: memref<1x64x128xf32, #tpu.memory_space<vmem>>, %arg8: memref<8x128xf32, #tpu.memory_space<vmem>>, %arg9: memref<8x128xf32, #tpu.memory_space<vmem>>, %arg10: memref<64x512xf32, #tpu.memory_space<vmem>>, %arg11: memref<64x128xf32, #tpu.memory_space<vmem>>) attributes {dimension_semantics = [#tpu.dimension_semantics<arbitrary>], iteration_bounds = array<i64: 2>, scalar_prefetch = 0 : i64, scratch_operands = 4 : i64, tpu.core_type = #tpu.core_type<tc>, window_params = [{transform_indices = @transform_0, window_bounds = array<i64: 1, 64, 16>}, {pipeline_mode = #tpu.pipeline_mode<synchronous>, transform_indices = @transform_1, window_bounds = array<i64: 16, 512>}, {pipeline_mode = #tpu.pipeline_mode<synchronous>, transform_indices = @transform_2, window_bounds = array<i64: 128, 512>}, {pipeline_mode = #tpu.pipeline_mode<synchronous>, transform_indices = @transform_3, window_bounds = array<i64: 1, 512>}, {pipeline_mode = #tpu.pipeline_mode<synchronous>, transform_indices = @transform_4, window_bounds = array<i64: 128, 128>}, {pipeline_mode = #tpu.pipeline_mode<synchronous>, transform_indices = @transform_5, window_bounds = array<i64: 1, 128>}, {transform_indices = @transform_6, window_bounds = array<i64: 1, 64, 128>}]} {
    %c0_i32 = arith.constant 0 : i32
    %0 = arith.cmpi eq, %arg0, %c0_i32 : i32
    %1 = arith.extui %0 : i1 to i32
    %c0_i32_0 = arith.constant 0 : i32
    %2 = arith.cmpi ne, %1, %c0_i32_0 : i32
    scf.if %2 {
      %cst_86 = arith.constant 0.000000e+00 : f32
      %298 = vector.broadcast %cst_86 : f32 to vector<8x128xf32>
      %c0_87 = arith.constant 0 : index
      %c0_88 = arith.constant 0 : index
      %299 = vector.load %arg8[%c0_87, %c0_88] : memref<8x128xf32, #tpu.memory_space<vmem>>, vector<8x128xf32>
      tpu.vector_store %arg8[%c0_87, %c0_88], %298 {strides = array<i32>} : memref<8x128xf32, #tpu.memory_space<vmem>>, vector<8x128xf32>,
      %cst_89 = arith.constant 0.000000e+00 : f32
      %300 = vector.broadcast %cst_89 : f32 to vector<8x128xf32>
      %c0_90 = arith.constant 0 : index
      %c0_91 = arith.constant 0 : index
      %301 = vector.load %arg9[%c0_90, %c0_91] : memref<8x128xf32, #tpu.memory_space<vmem>>, vector<8x128xf32>
      tpu.vector_store %arg9[%c0_90, %c0_91], %300 {strides = array<i32>} : memref<8x128xf32, #tpu.memory_space<vmem>>, vector<8x128xf32>,
    } else {
    }
    %c0 = arith.constant 0 : index
    %c0_1 = arith.constant 0 : index
    %c0_2 = arith.constant 0 : index
    %3 = vector.load %arg1[%c0, %c0_1, %c0_2] : memref<1x64x16xbf16, #tpu.memory_space<vmem>>, vector<1x64x16xbf16>
    %4 = vector.shape_cast %3 : vector<1x64x16xbf16> to vector<64x16xbf16>
    %c0_3 = arith.constant 0 : index
    %c0_4 = arith.constant 0 : index
    %5 = vector.load %arg2[%c0_3, %c0_4] : memref<16x512xbf16, #tpu.memory_space<vmem>>, vector<16x512xbf16>
    %cst = arith.constant dense<0.000000e+00> : vector<64x512xf32>
    %6 = tpu.matmul %4, %5, %cst {dimension_numbers = #tpu.dot_dimension_numbers<[1], [0], [0], [1], [0, 0, 1, 1], [], []>} : vector<64x16xbf16>, vector<16x512xbf16>, vector<64x512xf32> -> vector<64x512xf32>
    %c0_5 = arith.constant 0 : index
    %c0_6 = arith.constant 0 : index
    %7 = vector.load %arg4[%c0_5, %c0_6] : memref<1x512xf32, #tpu.memory_space<vmem>>, vector<1x512xf32>
    %8 = vector.broadcast %7 : vector<1x512xf32> to vector<64x512xf32>
    %9 = arith.addf %6, %8 : vector<64x512xf32>
    %c0_7 = arith.constant 0 : index
    %c0_8 = arith.constant 0 : index
    %10 = vector.load %arg10[%c0_7, %c0_8] : memref<64x512xf32, #tpu.memory_space<vmem>>, vector<64x512xf32>
    tpu.vector_store %arg10[%c0_7, %c0_8], %9 {strides = array<i32>} : memref<64x512xf32, #tpu.memory_space<vmem>>, vector<64x512xf32>,
    %c0_9 = arith.constant 0 : index
    %c0_10 = arith.constant 0 : index
    %11 = vector.load %arg3[%c0_9, %c0_10] : memref<128x512xbf16, #tpu.memory_space<vmem>>, vector<128x512xbf16>
    %c0_11 = arith.constant 0 : index
    %c0_12 = arith.constant 0 : index
    %12 = vector.load %arg8[%c0_11, %c0_12] : memref<8x128xf32, #tpu.memory_space<vmem>>, vector<8x128xf32>
    %c0_13 = arith.constant 0 : index
    %c0_14 = arith.constant 0 : index
    %13 = vector.load %arg9[%c0_13, %c0_14] : memref<8x128xf32, #tpu.memory_space<vmem>>, vector<8x128xf32>
    %c0_i32_15 = arith.constant 0 : i32
    %c8_i32 = arith.constant 8 : i32
    %14 = arith.muli %c0_i32_15, %c8_i32 : i32
    %15 = tpu.assume_multiple %14, 8 : i32
    %16 = arith.index_cast %15 : i32 to index
    %c0_16 = arith.constant 0 : index
    %17 = vector.load %arg10[%16, %c0_16] : memref<64x512xf32, #tpu.memory_space<vmem>>, vector<8x512xf32>
    %18 = arith.truncf %12 : vector<8x128xf32> to vector<8x128xbf16>
    %cst_17 = arith.constant dense<0.000000e+00> : vector<8x512xf32>
    %19 = tpu.matmul %18, %11, %cst_17 {dimension_numbers = #tpu.dot_dimension_numbers<[1], [0], [0], [1], [0, 0, 1, 1], [], []>} : vector<8x128xbf16>, vector<128x512xbf16>, vector<8x512xf32> -> vector<8x512xf32>
    %20 = arith.addf %17, %19 : vector<8x512xf32>
    %21 = vector.extract_strided_slice %20 {offsets = [0, 0], sizes = [8, 128], strides = [1, 1]} : vector<8x512xf32> to vector<8x128xf32>
    %22 = arith.negf %21 : vector<8x128xf32>
    %23 = math.exp %22 : vector<8x128xf32>
    %cst_18 = arith.constant 1.000000e+00 : f32
    %24 = vector.broadcast %cst_18 : f32 to vector<8x128xf32>
    %25 = arith.addf %24, %23 : vector<8x128xf32>
    %26 = arith.divf %24, %25 : vector<8x128xf32>
    %27 = vector.extract_strided_slice %20 {offsets = [0, 128], sizes = [8, 128], strides = [1, 1]} : vector<8x512xf32> to vector<8x128xf32>
    %28 = arith.negf %27 : vector<8x128xf32>
    %29 = math.exp %28 : vector<8x128xf32>
    %cst_19 = arith.constant 1.000000e+00 : f32
    %30 = vector.broadcast %cst_19 : f32 to vector<8x128xf32>
    %31 = arith.addf %30, %29 : vector<8x128xf32>
    %32 = arith.divf %30, %31 : vector<8x128xf32>
    %33 = vector.extract_strided_slice %20 {offsets = [0, 256], sizes = [8, 128], strides = [1, 1]} : vector<8x512xf32> to vector<8x128xf32>
    %34 = math.tanh %33 : vector<8x128xf32>
    %35 = vector.extract_strided_slice %20 {offsets = [0, 384], sizes = [8, 128], strides = [1, 1]} : vector<8x512xf32> to vector<8x128xf32>
    %36 = arith.negf %35 : vector<8x128xf32>
    %37 = math.exp %36 : vector<8x128xf32>
    %cst_20 = arith.constant 1.000000e+00 : f32
    %38 = vector.broadcast %cst_20 : f32 to vector<8x128xf32>
    %39 = arith.addf %38, %37 : vector<8x128xf32>
    %40 = arith.divf %38, %39 : vector<8x128xf32>
    %41 = arith.mulf %32, %13 : vector<8x128xf32>
    %42 = arith.mulf %26, %34 : vector<8x128xf32>
    %43 = arith.addf %41, %42 : vector<8x128xf32>
    %44 = math.tanh %43 : vector<8x128xf32>
    %45 = arith.mulf %40, %44 : vector<8x128xf32>
    %46 = arith.index_cast %15 : i32 to index
    %c0_21 = arith.constant 0 : index
    %47 = vector.load %arg11[%46, %c0_21] : memref<64x128xf32, #tpu.memory_space<vmem>>, vector<8x128xf32>
    tpu.vector_store %arg11[%46, %c0_21], %45 {strides = array<i32>} : memref<64x128xf32, #tpu.memory_space<vmem>>, vector<8x128xf32>,
    %c1_i32 = arith.constant 1 : i32
    %c8_i32_22 = arith.constant 8 : i32
    %48 = arith.muli %c1_i32, %c8_i32_22 : i32
    %49 = tpu.assume_multiple %48, 8 : i32
    %50 = arith.index_cast %49 : i32 to index
    %c0_23 = arith.constant 0 : index
    %51 = vector.load %arg10[%50, %c0_23] : memref<64x512xf32, #tpu.memory_space<vmem>>, vector<8x512xf32>
    %52 = arith.truncf %45 : vector<8x128xf32> to vector<8x128xbf16>
    %cst_24 = arith.constant dense<0.000000e+00> : vector<8x512xf32>
    %53 = tpu.matmul %52, %11, %cst_24 {dimension_numbers = #tpu.dot_dimension_numbers<[1], [0], [0], [1], [0, 0, 1, 1], [], []>} : vector<8x128xbf16>, vector<128x512xbf16>, vector<8x512xf32> -> vector<8x512xf32>
    %54 = arith.addf %51, %53 : vector<8x512xf32>
    %55 = vector.extract_strided_slice %54 {offsets = [0, 0], sizes = [8, 128], strides = [1, 1]} : vector<8x512xf32> to vector<8x128xf32>
    %56 = arith.negf %55 : vector<8x128xf32>
    %57 = math.exp %56 : vector<8x128xf32>
    %cst_25 = arith.constant 1.000000e+00 : f32
    %58 = vector.broadcast %cst_25 : f32 to vector<8x128xf32>
    %59 = arith.addf %58, %57 : vector<8x128xf32>
    %60 = arith.divf %58, %59 : vector<8x128xf32>
    %61 = vector.extract_strided_slice %54 {offsets = [0, 128], sizes = [8, 128], strides = [1, 1]} : vector<8x512xf32> to vector<8x128xf32>
    %62 = arith.negf %61 : vector<8x128xf32>
    %63 = math.exp %62 : vector<8x128xf32>
    %cst_26 = arith.constant 1.000000e+00 : f32
    %64 = vector.broadcast %cst_26 : f32 to vector<8x128xf32>
    %65 = arith.addf %64, %63 : vector<8x128xf32>
    %66 = arith.divf %64, %65 : vector<8x128xf32>
    %67 = vector.extract_strided_slice %54 {offsets = [0, 256], sizes = [8, 128], strides = [1, 1]} : vector<8x512xf32> to vector<8x128xf32>
    %68 = math.tanh %67 : vector<8x128xf32>
    %69 = vector.extract_strided_slice %54 {offsets = [0, 384], sizes = [8, 128], strides = [1, 1]} : vector<8x512xf32> to vector<8x128xf32>
    %70 = arith.negf %69 : vector<8x128xf32>
    %71 = math.exp %70 : vector<8x128xf32>
    %cst_27 = arith.constant 1.000000e+00 : f32
    %72 = vector.broadcast %cst_27 : f32 to vector<8x128xf32>
    %73 = arith.addf %72, %71 : vector<8x128xf32>
    %74 = arith.divf %72, %73 : vector<8x128xf32>
    %75 = arith.mulf %66, %43 : vector<8x128xf32>
    %76 = arith.mulf %60, %68 : vector<8x128xf32>
    %77 = arith.addf %75, %76 : vector<8x128xf32>
    %78 = math.tanh %77 : vector<8x128xf32>
    %79 = arith.mulf %74, %78 : vector<8x128xf32>
    %80 = arith.index_cast %49 : i32 to index
    %c0_28 = arith.constant 0 : index
    %81 = vector.load %arg11[%80, %c0_28] : memref<64x128xf32, #tpu.memory_space<vmem>>, vector<8x128xf32>
    tpu.vector_store %arg11[%80, %c0_28], %79 {strides = array<i32>} : memref<64x128xf32, #tpu.memory_space<vmem>>, vector<8x128xf32>,
    %c2_i32 = arith.constant 2 : i32
    %c8_i32_29 = arith.constant 8 : i32
    %82 = arith.muli %c2_i32, %c8_i32_29 : i32
    %83 = tpu.assume_multiple %82, 8 : i32
    %84 = arith.index_cast %83 : i32 to index
    %c0_30 = arith.constant 0 : index
    %85 = vector.load %arg10[%84, %c0_30] : memref<64x512xf32, #tpu.memory_space<vmem>>, vector<8x512xf32>
    %86 = arith.truncf %79 : vector<8x128xf32> to vector<8x128xbf16>
    %cst_31 = arith.constant dense<0.000000e+00> : vector<8x512xf32>
    %87 = tpu.matmul %86, %11, %cst_31 {dimension_numbers = #tpu.dot_dimension_numbers<[1], [0], [0], [1], [0, 0, 1, 1], [], []>} : vector<8x128xbf16>, vector<128x512xbf16>, vector<8x512xf32> -> vector<8x512xf32>
    %88 = arith.addf %85, %87 : vector<8x512xf32>
    %89 = vector.extract_strided_slice %88 {offsets = [0, 0], sizes = [8, 128], strides = [1, 1]} : vector<8x512xf32> to vector<8x128xf32>
    %90 = arith.negf %89 : vector<8x128xf32>
    %91 = math.exp %90 : vector<8x128xf32>
    %cst_32 = arith.constant 1.000000e+00 : f32
    %92 = vector.broadcast %cst_32 : f32 to vector<8x128xf32>
    %93 = arith.addf %92, %91 : vector<8x128xf32>
    %94 = arith.divf %92, %93 : vector<8x128xf32>
    %95 = vector.extract_strided_slice %88 {offsets = [0, 128], sizes = [8, 128], strides = [1, 1]} : vector<8x512xf32> to vector<8x128xf32>
    %96 = arith.negf %95 : vector<8x128xf32>
    %97 = math.exp %96 : vector<8x128xf32>
    %cst_33 = arith.constant 1.000000e+00 : f32
    %98 = vector.broadcast %cst_33 : f32 to vector<8x128xf32>
    %99 = arith.addf %98, %97 : vector<8x128xf32>
    %100 = arith.divf %98, %99 : vector<8x128xf32>
    %101 = vector.extract_strided_slice %88 {offsets = [0, 256], sizes = [8, 128], strides = [1, 1]} : vector<8x512xf32> to vector<8x128xf32>
    %102 = math.tanh %101 : vector<8x128xf32>
    %103 = vector.extract_strided_slice %88 {offsets = [0, 384], sizes = [8, 128], strides = [1, 1]} : vector<8x512xf32> to vector<8x128xf32>
    %104 = arith.negf %103 : vector<8x128xf32>
    %105 = math.exp %104 : vector<8x128xf32>
    %cst_34 = arith.constant 1.000000e+00 : f32
    %106 = vector.broadcast %cst_34 : f32 to vector<8x128xf32>
    %107 = arith.addf %106, %105 : vector<8x128xf32>
    %108 = arith.divf %106, %107 : vector<8x128xf32>
    %109 = arith.mulf %100, %77 : vector<8x128xf32>
    %110 = arith.mulf %94, %102 : vector<8x128xf32>
    %111 = arith.addf %109, %110 : vector<8x128xf32>
    %112 = math.tanh %111 : vector<8x128xf32>
    %113 = arith.mulf %108, %112 : vector<8x128xf32>
    %114 = arith.index_cast %83 : i32 to index
    %c0_35 = arith.constant 0 : index
    %115 = vector.load %arg11[%114, %c0_35] : memref<64x128xf32, #tpu.memory_space<vmem>>, vector<8x128xf32>
    tpu.vector_store %arg11[%114, %c0_35], %113 {strides = array<i32>} : memref<64x128xf32, #tpu.memory_space<vmem>>, vector<8x128xf32>,
    %c3_i32 = arith.constant 3 : i32
    %c8_i32_36 = arith.constant 8 : i32
    %116 = arith.muli %c3_i32, %c8_i32_36 : i32
    %117 = tpu.assume_multiple %116, 8 : i32
    %118 = arith.index_cast %117 : i32 to index
    %c0_37 = arith.constant 0 : index
    %119 = vector.load %arg10[%118, %c0_37] : memref<64x512xf32, #tpu.memory_space<vmem>>, vector<8x512xf32>
    %120 = arith.truncf %113 : vector<8x128xf32> to vector<8x128xbf16>
    %cst_38 = arith.constant dense<0.000000e+00> : vector<8x512xf32>
    %121 = tpu.matmul %120, %11, %cst_38 {dimension_numbers = #tpu.dot_dimension_numbers<[1], [0], [0], [1], [0, 0, 1, 1], [], []>} : vector<8x128xbf16>, vector<128x512xbf16>, vector<8x512xf32> -> vector<8x512xf32>
    %122 = arith.addf %119, %121 : vector<8x512xf32>
    %123 = vector.extract_strided_slice %122 {offsets = [0, 0], sizes = [8, 128], strides = [1, 1]} : vector<8x512xf32> to vector<8x128xf32>
    %124 = arith.negf %123 : vector<8x128xf32>
    %125 = math.exp %124 : vector<8x128xf32>
    %cst_39 = arith.constant 1.000000e+00 : f32
    %126 = vector.broadcast %cst_39 : f32 to vector<8x128xf32>
    %127 = arith.addf %126, %125 : vector<8x128xf32>
    %128 = arith.divf %126, %127 : vector<8x128xf32>
    %129 = vector.extract_strided_slice %122 {offsets = [0, 128], sizes = [8, 128], strides = [1, 1]} : vector<8x512xf32> to vector<8x128xf32>
    %130 = arith.negf %129 : vector<8x128xf32>
    %131 = math.exp %130 : vector<8x128xf32>
    %cst_40 = arith.constant 1.000000e+00 : f32
    %132 = vector.broadcast %cst_40 : f32 to vector<8x128xf32>
    %133 = arith.addf %132, %131 : vector<8x128xf32>
    %134 = arith.divf %132, %133 : vector<8x128xf32>
    %135 = vector.extract_strided_slice %122 {offsets = [0, 256], sizes = [8, 128], strides = [1, 1]} : vector<8x512xf32> to vector<8x128xf32>
    %136 = math.tanh %135 : vector<8x128xf32>
    %137 = vector.extract_strided_slice %122 {offsets = [0, 384], sizes = [8, 128], strides = [1, 1]} : vector<8x512xf32> to vector<8x128xf32>
    %138 = arith.negf %137 : vector<8x128xf32>
    %139 = math.exp %138 : vector<8x128xf32>
    %cst_41 = arith.constant 1.000000e+00 : f32
    %140 = vector.broadcast %cst_41 : f32 to vector<8x128xf32>
    %141 = arith.addf %140, %139 : vector<8x128xf32>
    %142 = arith.divf %140, %141 : vector<8x128xf32>
    %143 = arith.mulf %134, %111 : vector<8x128xf32>
    %144 = arith.mulf %128, %136 : vector<8x128xf32>
    %145 = arith.addf %143, %144 : vector<8x128xf32>
    %146 = math.tanh %145 : vector<8x128xf32>
    %147 = arith.mulf %142, %146 : vector<8x128xf32>
    %148 = arith.index_cast %117 : i32 to index
    %c0_42 = arith.constant 0 : index
    %149 = vector.load %arg11[%148, %c0_42] : memref<64x128xf32, #tpu.memory_space<vmem>>, vector<8x128xf32>
    tpu.vector_store %arg11[%148, %c0_42], %147 {strides = array<i32>} : memref<64x128xf32, #tpu.memory_space<vmem>>, vector<8x128xf32>,
    %c4_i32 = arith.constant 4 : i32
    %c8_i32_43 = arith.constant 8 : i32
    %150 = arith.muli %c4_i32, %c8_i32_43 : i32
    %151 = tpu.assume_multiple %150, 8 : i32
    %152 = arith.index_cast %151 : i32 to index
    %c0_44 = arith.constant 0 : index
    %153 = vector.load %arg10[%152, %c0_44] : memref<64x512xf32, #tpu.memory_space<vmem>>, vector<8x512xf32>
    %154 = arith.truncf %147 : vector<8x128xf32> to vector<8x128xbf16>
    %cst_45 = arith.constant dense<0.000000e+00> : vector<8x512xf32>
    %155 = tpu.matmul %154, %11, %cst_45 {dimension_numbers = #tpu.dot_dimension_numbers<[1], [0], [0], [1], [0, 0, 1, 1], [], []>} : vector<8x128xbf16>, vector<128x512xbf16>, vector<8x512xf32> -> vector<8x512xf32>
    %156 = arith.addf %153, %155 : vector<8x512xf32>
    %157 = vector.extract_strided_slice %156 {offsets = [0, 0], sizes = [8, 128], strides = [1, 1]} : vector<8x512xf32> to vector<8x128xf32>
    %158 = arith.negf %157 : vector<8x128xf32>
    %159 = math.exp %158 : vector<8x128xf32>
    %cst_46 = arith.constant 1.000000e+00 : f32
    %160 = vector.broadcast %cst_46 : f32 to vector<8x128xf32>
    %161 = arith.addf %160, %159 : vector<8x128xf32>
    %162 = arith.divf %160, %161 : vector<8x128xf32>
    %163 = vector.extract_strided_slice %156 {offsets = [0, 128], sizes = [8, 128], strides = [1, 1]} : vector<8x512xf32> to vector<8x128xf32>
    %164 = arith.negf %163 : vector<8x128xf32>
    %165 = math.exp %164 : vector<8x128xf32>
    %cst_47 = arith.constant 1.000000e+00 : f32
    %166 = vector.broadcast %cst_47 : f32 to vector<8x128xf32>
    %167 = arith.addf %166, %165 : vector<8x128xf32>
    %168 = arith.divf %166, %167 : vector<8x128xf32>
    %169 = vector.extract_strided_slice %156 {offsets = [0, 256], sizes = [8, 128], strides = [1, 1]} : vector<8x512xf32> to vector<8x128xf32>
    %170 = math.tanh %169 : vector<8x128xf32>
    %171 = vector.extract_strided_slice %156 {offsets = [0, 384], sizes = [8, 128], strides = [1, 1]} : vector<8x512xf32> to vector<8x128xf32>
    %172 = arith.negf %171 : vector<8x128xf32>
    %173 = math.exp %172 : vector<8x128xf32>
    %cst_48 = arith.constant 1.000000e+00 : f32
    %174 = vector.broadcast %cst_48 : f32 to vector<8x128xf32>
    %175 = arith.addf %174, %173 : vector<8x128xf32>
    %176 = arith.divf %174, %175 : vector<8x128xf32>
    %177 = arith.mulf %168, %145 : vector<8x128xf32>
    %178 = arith.mulf %162, %170 : vector<8x128xf32>
    %179 = arith.addf %177, %178 : vector<8x128xf32>
    %180 = math.tanh %179 : vector<8x128xf32>
    %181 = arith.mulf %176, %180 : vector<8x128xf32>
    %182 = arith.index_cast %151 : i32 to index
    %c0_49 = arith.constant 0 : index
    %183 = vector.load %arg11[%182, %c0_49] : memref<64x128xf32, #tpu.memory_space<vmem>>, vector<8x128xf32>
    tpu.vector_store %arg11[%182, %c0_49], %181 {strides = array<i32>} : memref<64x128xf32, #tpu.memory_space<vmem>>, vector<8x128xf32>,
    %c5_i32 = arith.constant 5 : i32
    %c8_i32_50 = arith.constant 8 : i32
    %184 = arith.muli %c5_i32, %c8_i32_50 : i32
    %185 = tpu.assume_multiple %184, 8 : i32
    %186 = arith.index_cast %185 : i32 to index
    %c0_51 = arith.constant 0 : index
    %187 = vector.load %arg10[%186, %c0_51] : memref<64x512xf32, #tpu.memory_space<vmem>>, vector<8x512xf32>
    %188 = arith.truncf %181 : vector<8x128xf32> to vector<8x128xbf16>
    %cst_52 = arith.constant dense<0.000000e+00> : vector<8x512xf32>
    %189 = tpu.matmul %188, %11, %cst_52 {dimension_numbers = #tpu.dot_dimension_numbers<[1], [0], [0], [1], [0, 0, 1, 1], [], []>} : vector<8x128xbf16>, vector<128x512xbf16>, vector<8x512xf32> -> vector<8x512xf32>
    %190 = arith.addf %187, %189 : vector<8x512xf32>
    %191 = vector.extract_strided_slice %190 {offsets = [0, 0], sizes = [8, 128], strides = [1, 1]} : vector<8x512xf32> to vector<8x128xf32>
    %192 = arith.negf %191 : vector<8x128xf32>
    %193 = math.exp %192 : vector<8x128xf32>
    %cst_53 = arith.constant 1.000000e+00 : f32
    %194 = vector.broadcast %cst_53 : f32 to vector<8x128xf32>
    %195 = arith.addf %194, %193 : vector<8x128xf32>
    %196 = arith.divf %194, %195 : vector<8x128xf32>
    %197 = vector.extract_strided_slice %190 {offsets = [0, 128], sizes = [8, 128], strides = [1, 1]} : vector<8x512xf32> to vector<8x128xf32>
    %198 = arith.negf %197 : vector<8x128xf32>
    %199 = math.exp %198 : vector<8x128xf32>
    %cst_54 = arith.constant 1.000000e+00 : f32
    %200 = vector.broadcast %cst_54 : f32 to vector<8x128xf32>
    %201 = arith.addf %200, %199 : vector<8x128xf32>
    %202 = arith.divf %200, %201 : vector<8x128xf32>
    %203 = vector.extract_strided_slice %190 {offsets = [0, 256], sizes = [8, 128], strides = [1, 1]} : vector<8x512xf32> to vector<8x128xf32>
    %204 = math.tanh %203 : vector<8x128xf32>
    %205 = vector.extract_strided_slice %190 {offsets = [0, 384], sizes = [8, 128], strides = [1, 1]} : vector<8x512xf32> to vector<8x128xf32>
    %206 = arith.negf %205 : vector<8x128xf32>
    %207 = math.exp %206 : vector<8x128xf32>
    %cst_55 = arith.constant 1.000000e+00 : f32
    %208 = vector.broadcast %cst_55 : f32 to vector<8x128xf32>
    %209 = arith.addf %208, %207 : vector<8x128xf32>
    %210 = arith.divf %208, %209 : vector<8x128xf32>
    %211 = arith.mulf %202, %179 : vector<8x128xf32>
    %212 = arith.mulf %196, %204 : vector<8x128xf32>
    %213 = arith.addf %211, %212 : vector<8x128xf32>
    %214 = math.tanh %213 : vector<8x128xf32>
    %215 = arith.mulf %210, %214 : vector<8x128xf32>
    %216 = arith.index_cast %185 : i32 to index
    %c0_56 = arith.constant 0 : index
    %217 = vector.load %arg11[%216, %c0_56] : memref<64x128xf32, #tpu.memory_space<vmem>>, vector<8x128xf32>
    tpu.vector_store %arg11[%216, %c0_56], %215 {strides = array<i32>} : memref<64x128xf32, #tpu.memory_space<vmem>>, vector<8x128xf32>,
    %c6_i32 = arith.constant 6 : i32
    %c8_i32_57 = arith.constant 8 : i32
    %218 = arith.muli %c6_i32, %c8_i32_57 : i32
    %219 = tpu.assume_multiple %218, 8 : i32
    %220 = arith.index_cast %219 : i32 to index
    %c0_58 = arith.constant 0 : index
    %221 = vector.load %arg10[%220, %c0_58] : memref<64x512xf32, #tpu.memory_space<vmem>>, vector<8x512xf32>
    %222 = arith.truncf %215 : vector<8x128xf32> to vector<8x128xbf16>
    %cst_59 = arith.constant dense<0.000000e+00> : vector<8x512xf32>
    %223 = tpu.matmul %222, %11, %cst_59 {dimension_numbers = #tpu.dot_dimension_numbers<[1], [0], [0], [1], [0, 0, 1, 1], [], []>} : vector<8x128xbf16>, vector<128x512xbf16>, vector<8x512xf32> -> vector<8x512xf32>
    %224 = arith.addf %221, %223 : vector<8x512xf32>
    %225 = vector.extract_strided_slice %224 {offsets = [0, 0], sizes = [8, 128], strides = [1, 1]} : vector<8x512xf32> to vector<8x128xf32>
    %226 = arith.negf %225 : vector<8x128xf32>
    %227 = math.exp %226 : vector<8x128xf32>
    %cst_60 = arith.constant 1.000000e+00 : f32
    %228 = vector.broadcast %cst_60 : f32 to vector<8x128xf32>
    %229 = arith.addf %228, %227 : vector<8x128xf32>
    %230 = arith.divf %228, %229 : vector<8x128xf32>
    %231 = vector.extract_strided_slice %224 {offsets = [0, 128], sizes = [8, 128], strides = [1, 1]} : vector<8x512xf32> to vector<8x128xf32>
    %232 = arith.negf %231 : vector<8x128xf32>
    %233 = math.exp %232 : vector<8x128xf32>
    %cst_61 = arith.constant 1.000000e+00 : f32
    %234 = vector.broadcast %cst_61 : f32 to vector<8x128xf32>
    %235 = arith.addf %234, %233 : vector<8x128xf32>
    %236 = arith.divf %234, %235 : vector<8x128xf32>
    %237 = vector.extract_strided_slice %224 {offsets = [0, 256], sizes = [8, 128], strides = [1, 1]} : vector<8x512xf32> to vector<8x128xf32>
    %238 = math.tanh %237 : vector<8x128xf32>
    %239 = vector.extract_strided_slice %224 {offsets = [0, 384], sizes = [8, 128], strides = [1, 1]} : vector<8x512xf32> to vector<8x128xf32>
    %240 = arith.negf %239 : vector<8x128xf32>
    %241 = math.exp %240 : vector<8x128xf32>
    %cst_62 = arith.constant 1.000000e+00 : f32
    %242 = vector.broadcast %cst_62 : f32 to vector<8x128xf32>
    %243 = arith.addf %242, %241 : vector<8x128xf32>
    %244 = arith.divf %242, %243 : vector<8x128xf32>
    %245 = arith.mulf %236, %213 : vector<8x128xf32>
    %246 = arith.mulf %230, %238 : vector<8x128xf32>
    %247 = arith.addf %245, %246 : vector<8x128xf32>
    %248 = math.tanh %247 : vector<8x128xf32>
    %249 = arith.mulf %244, %248 : vector<8x128xf32>
    %250 = arith.index_cast %219 : i32 to index
    %c0_63 = arith.constant 0 : index
    %251 = vector.load %arg11[%250, %c0_63] : memref<64x128xf32, #tpu.memory_space<vmem>>, vector<8x128xf32>
    tpu.vector_store %arg11[%250, %c0_63], %249 {strides = array<i32>} : memref<64x128xf32, #tpu.memory_space<vmem>>, vector<8x128xf32>,
    %c7_i32 = arith.constant 7 : i32
    %c8_i32_64 = arith.constant 8 : i32
    %252 = arith.muli %c7_i32, %c8_i32_64 : i32
    %253 = tpu.assume_multiple %252, 8 : i32
    %254 = arith.index_cast %253 : i32 to index
    %c0_65 = arith.constant 0 : index
    %255 = vector.load %arg10[%254, %c0_65] : memref<64x512xf32, #tpu.memory_space<vmem>>, vector<8x512xf32>
    %256 = arith.truncf %249 : vector<8x128xf32> to vector<8x128xbf16>
    %cst_66 = arith.constant dense<0.000000e+00> : vector<8x512xf32>
    %257 = tpu.matmul %256, %11, %cst_66 {dimension_numbers = #tpu.dot_dimension_numbers<[1], [0], [0], [1], [0, 0, 1, 1], [], []>} : vector<8x128xbf16>, vector<128x512xbf16>, vector<8x512xf32> -> vector<8x512xf32>
    %258 = arith.addf %255, %257 : vector<8x512xf32>
    %259 = vector.extract_strided_slice %258 {offsets = [0, 0], sizes = [8, 128], strides = [1, 1]} : vector<8x512xf32> to vector<8x128xf32>
    %260 = arith.negf %259 : vector<8x128xf32>
    %261 = math.exp %260 : vector<8x128xf32>
    %cst_67 = arith.constant 1.000000e+00 : f32
    %262 = vector.broadcast %cst_67 : f32 to vector<8x128xf32>
    %263 = arith.addf %262, %261 : vector<8x128xf32>
    %264 = arith.divf %262, %263 : vector<8x128xf32>
    %265 = vector.extract_strided_slice %258 {offsets = [0, 128], sizes = [8, 128], strides = [1, 1]} : vector<8x512xf32> to vector<8x128xf32>
    %266 = arith.negf %265 : vector<8x128xf32>
    %267 = math.exp %266 : vector<8x128xf32>
    %cst_68 = arith.constant 1.000000e+00 : f32
    %268 = vector.broadcast %cst_68 : f32 to vector<8x128xf32>
    %269 = arith.addf %268, %267 : vector<8x128xf32>
    %270 = arith.divf %268, %269 : vector<8x128xf32>
    %271 = vector.extract_strided_slice %258 {offsets = [0, 256], sizes = [8, 128], strides = [1, 1]} : vector<8x512xf32> to vector<8x128xf32>
    %272 = math.tanh %271 : vector<8x128xf32>
    %273 = vector.extract_strided_slice %258 {offsets = [0, 384], sizes = [8, 128], strides = [1, 1]} : vector<8x512xf32> to vector<8x128xf32>
    %274 = arith.negf %273 : vector<8x128xf32>
    %275 = math.exp %274 : vector<8x128xf32>
    %cst_69 = arith.constant 1.000000e+00 : f32
    %276 = vector.broadcast %cst_69 : f32 to vector<8x128xf32>
    %277 = arith.addf %276, %275 : vector<8x128xf32>
    %278 = arith.divf %276, %277 : vector<8x128xf32>
    %279 = arith.mulf %270, %247 : vector<8x128xf32>
    %280 = arith.mulf %264, %272 : vector<8x128xf32>
    %281 = arith.addf %279, %280 : vector<8x128xf32>
    %282 = math.tanh %281 : vector<8x128xf32>
    %283 = arith.mulf %278, %282 : vector<8x128xf32>
    %284 = arith.index_cast %253 : i32 to index
    %c0_70 = arith.constant 0 : index
    %285 = vector.load %arg11[%284, %c0_70] : memref<64x128xf32, #tpu.memory_space<vmem>>, vector<8x128xf32>
    tpu.vector_store %arg11[%284, %c0_70], %283 {strides = array<i32>} : memref<64x128xf32, #tpu.memory_space<vmem>>, vector<8x128xf32>,
    %c8_i32_71 = arith.constant 8 : i32
    %c0_72 = arith.constant 0 : index
    %c0_73 = arith.constant 0 : index
    %286 = vector.load %arg8[%c0_72, %c0_73] : memref<8x128xf32, #tpu.memory_space<vmem>>, vector<8x128xf32>
    tpu.vector_store %arg8[%c0_72, %c0_73], %283 {strides = array<i32>} : memref<8x128xf32, #tpu.memory_space<vmem>>, vector<8x128xf32>,
    %c0_74 = arith.constant 0 : index
    %c0_75 = arith.constant 0 : index
    %287 = vector.load %arg9[%c0_74, %c0_75] : memref<8x128xf32, #tpu.memory_space<vmem>>, vector<8x128xf32>
    tpu.vector_store %arg9[%c0_74, %c0_75], %281 {strides = array<i32>} : memref<8x128xf32, #tpu.memory_space<vmem>>, vector<8x128xf32>,
    %c0_76 = arith.constant 0 : index
    %c0_77 = arith.constant 0 : index
    %288 = vector.load %arg11[%c0_76, %c0_77] : memref<64x128xf32, #tpu.memory_space<vmem>>, vector<64x128xf32>
    %289 = arith.truncf %288 : vector<64x128xf32> to vector<64x128xbf16>
    %c0_78 = arith.constant 0 : index
    %c0_79 = arith.constant 0 : index
    %290 = vector.load %arg5[%c0_78, %c0_79] : memref<128x128xbf16, #tpu.memory_space<vmem>>, vector<128x128xbf16>
    %cst_80 = arith.constant dense<0.000000e+00> : vector<64x128xf32>
    %291 = tpu.matmul %289, %290, %cst_80 {dimension_numbers = #tpu.dot_dimension_numbers<[1], [0], [0], [1], [0, 0, 1, 1], [], []>} : vector<64x128xbf16>, vector<128x128xbf16>, vector<64x128xf32> -> vector<64x128xf32>
    %c0_81 = arith.constant 0 : index
    %c0_82 = arith.constant 0 : index
    %292 = vector.load %arg6[%c0_81, %c0_82] : memref<1x128xf32, #tpu.memory_space<vmem>>, vector<1x128xf32>
    %293 = vector.broadcast %292 : vector<1x128xf32> to vector<64x128xf32>
    %294 = arith.addf %291, %293 : vector<64x128xf32>
    %c0_83 = arith.constant 0 : index
    %c0_84 = arith.constant 0 : index
    %c0_85 = arith.constant 0 : index
    %295 = vector.load %arg7[%c0_83, %c0_84, %c0_85] : memref<1x64x128xf32, #tpu.memory_space<vmem>>, vector<1x64x128xf32>
    %296 = vector.shape_cast %295 : vector<1x64x128xf32> to vector<64x128xf32>
    %297 = vector.shape_cast %294 : vector<64x128xf32> to vector<1x64x128xf32>
    tpu.vector_store %arg7[%c0_83, %c0_84, %c0_85], %297 {strides = array<i32>} : memref<1x64x128xf32, #tpu.memory_space<vmem>>, vector<1x64x128xf32>,
    return
  }
  func.func @transform_0(%arg0: i32) -> (i32, i32, i32) {
    %c0_i32 = arith.constant 0 : i32
    %c0_i32_0 = arith.constant 0 : i32
    %c0_i32_1 = arith.constant 0 : i32
    return %arg0, %c0_i32, %c0_i32_0 : i32, i32, i32
  }
  func.func @transform_1(%arg0: i32) -> (i32, i32) {
    %c0_i32 = arith.constant 0 : i32
    %c0_i32_0 = arith.constant 0 : i32
    %c0_i32_1 = arith.constant 0 : i32
    return %c0_i32, %c0_i32_0 : i32, i32
  }
  func.func @transform_2(%arg0: i32) -> (i32, i32) {
    %c0_i32 = arith.constant 0 : i32
    %c0_i32_0 = arith.constant 0 : i32
    %c0_i32_1 = arith.constant 0 : i32
    return %c0_i32, %c0_i32_0 : i32, i32
  }
  func.func @transform_3(%arg0: i32) -> (i32, i32) {
    %c0_i32 = arith.constant 0 : i32
    %c0_i32_0 = arith.constant 0 : i32
    %c0_i32_1 = arith.constant 0 : i32
    return %c0_i32, %c0_i32_0 : i32, i32
  }
  func.func @transform_4(%arg0: i32) -> (i32, i32) {
    %c0_i32 = arith.constant 0 : i32
    %c0_i32_0 = arith.constant 0 : i32
    %c0_i32_1 = arith.constant 0 : i32
    return %c0_i32, %c0_i32_0 : i32, i32
  }
  func.func @transform_5(%arg0: i32) -> (i32, i32) {
    %c0_i32 = arith.constant 0 : i32
    %c0_i32_0 = arith.constant 0 : i32
    %c0_i32_1 = arith.constant 0 : i32
    return %c0_i32, %c0_i32_0 : i32, i32
  }
  func.func @transform_6(%arg0: i32) -> (i32, i32, i32) {
    %c0_i32 = arith.constant 0 : i32
    %c0_i32_0 = arith.constant 0 : i32
    %c0_i32_1 = arith.constant 0 : i32
    return %arg0, %c0_i32, %c0_i32_0 : i32, i32, i32
  }
}

</mosaic_0001>

<llo_original>
// kernel: tpu_custom_call.1
$region0: #{tpu_custom_call.1}
  #allocation0 [shape = 'u32[]', space=smem, size = 0x4, offset = 0x4, fixed_abs, tag = 'smem constant byte address 0x4 - core index']
  #allocation1 [shape = 'u32[144,128]{1,0:T(1,128)}', space=vmem, size = 0x12000, scoped, tag = 'internal scratch']
  #allocation2 [shape = 'f32[8,128]{1,0:T(8,128)}', space=vmem, size = 0x1000, scoped, tag = 'scratch operand']
  #allocation3 [shape = 'f32[8,128]{1,0:T(8,128)}', space=vmem, size = 0x1000, scoped, tag = 'scratch operand']
  #allocation4 [shape = 'f32[64,512]{1,0:T(8,128)}', space=vmem, size = 0x20000, scoped, tag = 'scratch operand']
  #allocation5 [shape = 'f32[64,128]{1,0:T(8,128)}', space=vmem, size = 0x8000, scoped, tag = 'scratch operand']
  %s0 = inlined_call_operand.vmem [shape: bf16[2,64,16], index: 0, kind: input, shape index: {}]
  %s1 = inlined_call_operand.hbm [shape: bf16[16,512], index: 1, kind: input, shape index: {}]
  %s2 = inlined_call_operand.hbm [shape: bf16[128,512], index: 2, kind: input, shape index: {}]
  %s3 = inlined_call_operand.vmem [shape: f32[1,512], index: 3, kind: input, shape index: {}]
  %s4 = inlined_call_operand.vmem [shape: bf16[128,128], index: 4, kind: input, shape index: {}]
  %s5 = inlined_call_operand.vmem [shape: f32[1,128], index: 5, kind: input, shape index: {}]
  %s6 = inlined_call_operand.hbm [shape: f32[2,64,128], index: 6, kind: output, shape index: {}]
  %s7 = sld [smem:[#allocation0]]
  $region69: #{tpu_custom_call.1} parent=0
    _
  %s9 = ssub.s32 1, %s7
  %s10 = scalar_select 0, %s9, %s7
  $region1: #{tpu_custom_call.1} parent=0
    #allocation6 [shape = 'u8[16384]{0}', space=vmem, size = 0x4000, scoped, tag = 'input window, operand 1, single buffered']
    #allocation7 [shape = 's32[2]{0}', space=sflag, size = 0x8, scoped, tag = 'scoped memory for tpu_custom_call.1']
    #allocation8 [shape = 's32[2]{0}', space=sflag, size = 0x8, scoped, tag = 'scoped memory for tpu_custom_call.1']
    #allocation9 [shape = 'u8[131072]{0}', space=vmem, size = 0x20000, scoped, tag = 'input window, operand 2, single buffered']
    #allocation10 [shape = 's32[1]{0}', space=sflag, size = 0x4, scoped, tag = 'scoped memory for tpu_custom_call.1']
    #allocation11 [shape = 'u8[65536]{0}', space=vmem, size = 0x10000, scoped, tag = 'output window, operand 0']
    %11 = vsyncpa [#allocation7], 0
    %12 = vsyncpa [#allocation10], 0
    %13 = vsyncpa [#allocation8], 0
    %s14 = scalar_lea.sflag [#allocation8], 1
    %15 = vsyncpa %s14, 0
    loop: start=0, step=1, limit=4
    $region2: #{tpu_custom_call.1} parent=1 // loop_pre_header
      _
    $region3: #{tpu_custom_call.1} parent=1 // loop_header
      %s17 = sphi 0, %s21
      %p18 = scmp.ge.s32.totalorder %s17, 4
      %s27 = sphi 0, %s29
      %s30 = sphi 0, %s27
      %s31 = sphi 0, %s30
      %s47 = sphi 0, %s31
      %s51 = sphi 0, %s51
      %s53 = sphi 0, %s51
      %s54 = sphi 0, %s53
      %s68 = sphi 0, %s54
      %s72 = sphi 0, %s72
      %s74 = sphi 0, %s72
      %s75 = sphi 0, %s74
      %s89 = sphi 0, %s75
      %s93 = sphi 0, %s93
      %s95 = sphi 0, %s93
      %s96 = sphi 0, %s95
      %s110 = sphi 0, %s96
      %s114 = sphi 0, %s114
      %s116 = sphi 0, %s114
      %s117 = sphi 0, %s116
      %s131 = sphi 0, %s117
      %s135 = sphi 0, %s135
      %s137 = sphi 0, %s135
      %s138 = sphi 0, %s137
      %s152 = sphi 0, %s138
      %s158 = sphi 0, %s160
      %s161 = sphi 0, %s158
      %s162 = sphi 0, %s161
      %s178 = sphi 0, %s162
    $region4: #{tpu_custom_call.1} parent=1 // loop_header_branch
      %20 = sbr.rel (%p18) target = $region8
    $region5: #{tpu_custom_call.1} parent=1 // loop_body
      %s22 = ssub.s32 %s17, 1
      %s23 = ssub.s32 %s17, 2
      %s24 = sadd.s32 %s17, 1
      %s25 = ssub.s32 %s17, %s24
      %p26 = scmp.eq.s32.totalorder %s25, 0
      %s28 = sadd.s32 %s27, 1
      %s29 = scalar_select %p26, %s27, %s28
      %p32 = pneg %p26
      %p33 = scmp.eq.s32.totalorder %s17, 1
      %p34 = por %p32, %p33
      %p35 = scmp.ne.s32.totalorder %s27, %s30
      %p36 = scmp.eq.s32.totalorder %s17, 0
      %p37 = por %p35, %p36
      %p38 = scmp.ne.s32.totalorder %s27, %s30
      %p39 = scmp.eq.s32.totalorder %s22, 1
      %p40 = por %p38, %p39
      %p41 = scmp.ne.s32.totalorder %s30, %s31
      %p42 = scmp.eq.s32.totalorder %s22, 0
      %p43 = por %p41, %p42
      %p44 = scmp.ne.s32.totalorder %s30, %s31
      %p45 = scmp.eq.s32.totalorder %s23, 1
      %p46 = por %p44, %p45
      %p48 = scmp.ne.s32.totalorder %s31, %s47
      %p49 = scmp.eq.s32.totalorder %s23, 0
      %p50 = por %p48, %p49
      %s52 = sadd.s32 %s51, 1
      %p55 = scmp.eq.s32.totalorder %s17, 1
      %p56 = scmp.ne.s32.totalorder %s51, %s53
      %p57 = scmp.eq.s32.totalorder %s17, 0
      %p58 = por %p56, %p57
      %p59 = scmp.ne.s32.totalorder %s51, %s53
      %p60 = scmp.eq.s32.totalorder %s22, 1
      %p61 = por %p59, %p60
      %p62 = scmp.ne.s32.totalorder %s53, %s54
      %p63 = scmp.eq.s32.totalorder %s22, 0
      %p64 = por %p62, %p63
      %p65 = scmp.ne.s32.totalorder %s53, %s54
      %p66 = scmp.eq.s32.totalorder %s23, 1
      %p67 = por %p65, %p66
      %p69 = scmp.ne.s32.totalorder %s54, %s68
      %p70 = scmp.eq.s32.totalorder %s23, 0
      %p71 = por %p69, %p70
      %s73 = sadd.s32 %s72, 1
      %p76 = scmp.eq.s32.totalorder %s17, 1
      %p77 = scmp.ne.s32.totalorder %s72, %s74
      %p78 = scmp.eq.s32.totalorder %s17, 0
      %p79 = por %p77, %p78
      %p80 = scmp.ne.s32.totalorder %s72, %s74
      %p81 = scmp.eq.s32.totalorder %s22, 1
      %p82 = por %p80, %p81
      %p83 = scmp.ne.s32.totalorder %s74, %s75
      %p84 = scmp.eq.s32.totalorder %s22, 0
      %p85 = por %p83, %p84
      %p86 = scmp.ne.s32.totalorder %s74, %s75
      %p87 = scmp.eq.s32.totalorder %s23, 1
      %p88 = por %p86, %p87
      %p90 = scmp.ne.s32.totalorder %s75, %s89
      %p91 = scmp.eq.s32.totalorder %s23, 0
      %p92 = por %p90, %p91
      %s94 = sadd.s32 %s93, 1
      %p97 = scmp.eq.s32.totalorder %s17, 1
      %p98 = scmp.ne.s32.totalorder %s93, %s95
      %p99 = scmp.eq.s32.totalorder %s17, 0
      %p100 = por %p98, %p99
      %p101 = scmp.ne.s32.totalorder %s93, %s95
      %p102 = scmp.eq.s32.totalorder %s22, 1
      %p103 = por %p101, %p102
      %p104 = scmp.ne.s32.totalorder %s95, %s96
      %p105 = scmp.eq.s32.totalorder %s22, 0
      %p106 = por %p104, %p105
      %p107 = scmp.ne.s32.totalorder %s95, %s96
      %p108 = scmp.eq.s32.totalorder %s23, 1
      %p109 = por %p107, %p108
      %p111 = scmp.ne.s32.totalorder %s96, %s110
      %p112 = scmp.eq.s32.totalorder %s23, 0
      %p113 = por %p111, %p112
      %s115 = sadd.s32 %s114, 1
      %p118 = scmp.eq.s32.totalorder %s17, 1
      %p119 = scmp.ne.s32.totalorder %s114, %s116
      %p120 = scmp.eq.s32.totalorder %s17, 0
      %p121 = por %p119, %p120
      %p122 = scmp.ne.s32.totalorder %s114, %s116
      %p123 = scmp.eq.s32.totalorder %s22, 1
      %p124 = por %p122, %p123
      %p125 = scmp.ne.s32.totalorder %s116, %s117
      %p126 = scmp.eq.s32.totalorder %s22, 0
      %p127 = por %p125, %p126
      %p128 = scmp.ne.s32.totalorder %s116, %s117
      %p129 = scmp.eq.s32.totalorder %s23, 1
      %p130 = por %p128, %p129
      %p132 = scmp.ne.s32.totalorder %s117, %s131
      %p133 = scmp.eq.s32.totalorder %s23, 0
      %p134 = por %p132, %p133
      %s136 = sadd.s32 %s135, 1
      %p139 = scmp.eq.s32.totalorder %s17, 1
      %p140 = scmp.ne.s32.totalorder %s135, %s137
      %p141 = scmp.eq.s32.totalorder %s17, 0
      %p142 = por %p140, %p141
      %p143 = scmp.ne.s32.totalorder %s135, %s137
      %p144 = scmp.eq.s32.totalorder %s22, 1
      %p145 = por %p143, %p144
      %p146 = scmp.ne.s32.totalorder %s137, %s138
      %p147 = scmp.eq.s32.totalorder %s22, 0
      %p148 = por %p146, %p147
      %p149 = scmp.ne.s32.totalorder %s137, %s138
      %p150 = scmp.eq.s32.totalorder %s23, 1
      %p151 = por %p149, %p150
      %p153 = scmp.ne.s32.totalorder %s138, %s152
      %p154 = scmp.eq.s32.totalorder %s23, 0
      %p155 = por %p153, %p154
      %s156 = ssub.s32 %s17, %s24
      %p157 = scmp.eq.s32.totalorder %s156, 0
      %s159 = sadd.s32 %s158, 1
      %s160 = scalar_select %p157, %s158, %s159
      %p163 = pneg %p157
      %p164 = scmp.eq.s32.totalorder %s17, 1
      %p165 = por %p163, %p164
      %p166 = scmp.ne.s32.totalorder %s158, %s161
      %p167 = scmp.eq.s32.totalorder %s17, 0
      %p168 = por %p166, %p167
      %p169 = scmp.ne.s32.totalorder %s158, %s161
      %p170 = scmp.eq.s32.totalorder %s22, 1
      %p171 = por %p169, %p170
      %p172 = scmp.ne.s32.totalorder %s161, %s162
      %p173 = scmp.eq.s32.totalorder %s22, 0
      %p174 = por %p172, %p173
      %p175 = scmp.ne.s32.totalorder %s161, %s162
      %p176 = scmp.eq.s32.totalorder %s23, 1
      %p177 = por %p175, %p176
      %p179 = scmp.ne.s32.totalorder %s162, %s178
      %p180 = scmp.eq.s32.totalorder %s23, 0
      %p181 = por %p179, %p180
      %p182 = scmp.le.s32.totalorder 1, %s17
      %p183 = scmp.lt.s32.totalorder %s17, 3
      %p184 = pnand %p182, %p183
      %p185 = pneg %p184
      // Predicated region
      $region9: #{tpu_custom_call.1} parent=5 // pred_check
        _
      $region10: #{tpu_custom_call.1} parent=5 // pred_check_branch
        %187 = sbr.rel (%p184) target = $region12
      $region11: #{tpu_custom_call.1} parent=5 // pred_region
        %s188 = ssub.s32 %s17, 1
        // Predicated region
        $region13: #{tpu_custom_call.1} parent=11 // pred_check
          %p189 = pneg %p64
        $region14: #{tpu_custom_call.1} parent=11 // pred_check_branch
          %191 = sbr.rel (%p189) target = $region16
        $region15: #{tpu_custom_call.1} parent=11 // pred_region
          %s193 = ssub.s32 512, 512
          %194 = vsyncadd [#allocation7], %s193
          %s195 = sshll.u32 [#allocation6], 4
          %s196 = int_to_ptr.vmem [resolvable:$true] %s195
          %201 = dma.hbm_to_vmem [thread:$0]  %s1, 512, %s196, [#allocation7], 256, 256, 16
        $region16: #{tpu_custom_call.1} parent=11 // pred_fallthru
          _
        // Predicated region
        $region17: #{tpu_custom_call.1} parent=11 // pred_check
          %p202 = pneg %p85
        $region18: #{tpu_custom_call.1} parent=11 // pred_check_branch
          %204 = sbr.rel (%p202) target = $region20
        $region19: #{tpu_custom_call.1} parent=11 // pred_region
          %s206 = ssub.s32 4096, 4096
          %207 = vsyncadd [#allocation10], %s206
          %s208 = sshll.u32 [#allocation9], 4
          %s209 = int_to_ptr.vmem [resolvable:$true] %s208
          %214 = dma.hbm_to_vmem [thread:$0]  %s2, 4096, %s209, [#allocation10], 256, 256, 16
        $region20: #{tpu_custom_call.1} parent=11 // pred_fallthru
          _
        // Predicated region
        $region21: #{tpu_custom_call.1} parent=11 // pred_check
          %p215 = pneg %p106
        $region22: #{tpu_custom_call.1} parent=11 // pred_check_branch
          %217 = sbr.rel (%p215) target = $region24
        $region23: #{tpu_custom_call.1} parent=11 // pred_region
          _
        $region24: #{tpu_custom_call.1} parent=11 // pred_fallthru
          _
        // Predicated region
        $region25: #{tpu_custom_call.1} parent=11 // pred_check
          %p218 = pneg %p127
        $region26: #{tpu_custom_call.1} parent=11 // pred_check_branch
          %220 = sbr.rel (%p218) target = $region28
        $region27: #{tpu_custom_call.1} parent=11 // pred_region
          _
        $region28: #{tpu_custom_call.1} parent=11 // pred_fallthru
          _
        // Predicated region
        $region29: #{tpu_custom_call.1} parent=11 // pred_check
          %p221 = pneg %p148
        $region30: #{tpu_custom_call.1} parent=11 // pred_check_branch
          %223 = sbr.rel (%p221) target = $region32
        $region31: #{tpu_custom_call.1} parent=11 // pred_region
          _
        $region32: #{tpu_custom_call.1} parent=11 // pred_fallthru
          _
      $region12: #{tpu_custom_call.1} parent=5 // pred_fallthru
        _
      %p224 = scmp.lt.s32.totalorder %s17, 2
      // Predicated region
      $region33: #{tpu_custom_call.1} parent=5 // pred_check
        %p225 = pneg %p224
      $region34: #{tpu_custom_call.1} parent=5 // pred_check_branch
        %227 = sbr.rel (%p225) target = $region36
      $region35: #{tpu_custom_call.1} parent=5 // pred_region
        // Predicated region
        $region37: #{tpu_custom_call.1} parent=35 // pred_check
          %p228 = pneg %p37
        $region38: #{tpu_custom_call.1} parent=35 // pred_check_branch
          %230 = sbr.rel (%p228) target = $region40
        $region39: #{tpu_custom_call.1} parent=35 // pred_region
          %p231 = scmp.lt.s32.totalorder %s17, 1
          %s232 = scalar_select %p231, %s17, 1
          %s233 = smul.addr %s232, 8
          %s234 = smul.addr %s233, 4
          %s235 = scalar_lea.vmem %s0, %s234
        $region40: #{tpu_custom_call.1} parent=35 // pred_fallthru
          _
      $region36: #{tpu_custom_call.1} parent=5 // pred_fallthru
        _
      %p236 = scmp.le.s32.totalorder 1, %s17
      %p237 = scmp.lt.s32.totalorder %s17, 3
      %p238 = pnand %p236, %p237
      %p239 = pneg %p238
      // Predicated region
      $region41: #{tpu_custom_call.1} parent=5 // pred_check
        _
      $region42: #{tpu_custom_call.1} parent=5 // pred_check_branch
        %241 = sbr.rel (%p238) target = $region44
      $region43: #{tpu_custom_call.1} parent=5 // pred_region
        %s242 = ssub.s32 %s17, 1
        // Predicated region
        $region45: #{tpu_custom_call.1} parent=43 // pred_check
          %p243 = pneg %p64
        $region46: #{tpu_custom_call.1} parent=43 // pred_check_branch
          %245 = sbr.rel (%p243) target = $region48
        $region47: #{tpu_custom_call.1} parent=43 // pred_region
          %246 = dma.done [#allocation7], 512
        $region48: #{tpu_custom_call.1} parent=43 // pred_fallthru
          _
        // Predicated region
        $region49: #{tpu_custom_call.1} parent=43 // pred_check
          %p247 = pneg %p85
        $region50: #{tpu_custom_call.1} parent=43 // pred_check_branch
          %249 = sbr.rel (%p247) target = $region52
        $region51: #{tpu_custom_call.1} parent=43 // pred_region
          %250 = dma.done [#allocation10], 4096
        $region52: #{tpu_custom_call.1} parent=43 // pred_fallthru
          _
        %p251 = scmp.lt.s32.totalorder %s22, 1
        %s252 = scalar_select %p251, %s22, 1
        %s253 = smul.addr %s252, 8
        %s254 = smul.addr %s253, 4
        %s255 = scalar_lea.vmem %s0, %s254
        %p256 = pneg %p43
        %p257 = pneg %p40
        %p258 = pneg %p64
        %p259 = pneg %p61
        %p260 = pneg %p85
        %p261 = pneg %p82
        %p262 = pneg %p106
        %p263 = pneg %p103
        %p264 = pneg %p127
        %p265 = pneg %p124
        %p266 = pneg %p148
        %p267 = pneg %p145
        %p268 = pneg %p174
        %p269 = pneg %p171
        %s270 = sand.u32 %s161, 1
        %s271 = scalar_lea.sflag [#allocation8], %s270
        %s272 = sand.u32 %s161, 1
        %s273 = smul.addr %s272, 64
        %s274 = scalar_lea.vmem [#allocation11], %s273
        %p275 = scmp.lt.s32.totalorder %s22, 1
        %s276 = scalar_select %p275, %s22, 1
        %s277 = smul.addr %s276, 8
        %s278 = smul.addr %s277, 4
        %s279 = scalar_lea.vmem %s0, %s278
        %p281 = scmp.eq.s32.totalorder %s22, 0
        // Predicated region
        $region53: #{tpu_custom_call.1} parent=43 // pred_check
          %p282 = pneg %p281
        $region54: #{tpu_custom_call.1} parent=43 // pred_check_branch
          %284 = sbr.rel (%p282) target = $region56
        $region55: #{tpu_custom_call.1} parent=43 // pred_region
          %285 = vst [vmem:[#allocation2] sm:$0xff] 0.0
          %286 = vst [vmem:[#allocation3] sm:$0xff] 0.0
        $region56: #{tpu_custom_call.1} parent=43 // pred_fallthru
          _
        %v287 = vld [vmem:[%s279] sm:$0xf]
        %v288 = vld [vmem:[%s279 + $0x4] sm:$0xf]
        %v289 = vld [vmem:[%s279 + $0x8] sm:$0xf]
        %v290 = vld [vmem:[%s279 + $0xc] sm:$0xf]
        %v291 = vld [vmem:[%s279 + $0x10] sm:$0xf]
        %v292 = vld [vmem:[%s279 + $0x14] sm:$0xf]
        %v293 = vld [vmem:[%s279 + $0x18] sm:$0xf]
        %v294 = vld [vmem:[%s279 + $0x1c] sm:$0xf]
        %v295 = vld [vmem:[#allocation6] sm:$0xff]
        %v296 = vld [vmem:[#allocation6 + $0x8] sm:$0xff]
        %v297 = vld [vmem:[#allocation6 + $0x10] sm:$0xff]
        %v298 = vld [vmem:[#allocation6 + $0x18] sm:$0xff]
        %v299 = vld [vmem:[%s3] sm:$0xf]
        %v301 = vlaneseq
        %v302 = vshrl.u32 %v301, 7
        %v303 = vsub.s32 0, %v302
        %v304 = vrot.slane %v299, %v303
        %v305 = vlaneseq
        %v306 = vshrl.u32 %v305, 7
        %v307 = vsub.s32 1, %v306
        %v308 = vrot.slane %v299, %v307
        %v309 = vlaneseq
        %v310 = vshrl.u32 %v309, 7
        %v311 = vsub.s32 2, %v310
        %v312 = vrot.slane %v299, %v311
        %v313 = vlaneseq
        %v314 = vshrl.u32 %v313, 7
        %v315 = vsub.s32 3, %v314
        %v316 = vrot.slane %v299, %v315
        %v329 = vunpack.c.l.b16 %v287
        %v330 = vunpack.c.l.b16 %v288
        %v331 = vunpack.c.l.b16 %v289
        %v332 = vunpack.c.l.b16 %v290
        %v333 = vunpack.c.l.b16 %v291
        %v334 = vunpack.c.l.b16 %v292
        %v335 = vunpack.c.l.b16 %v293
        %v336 = vunpack.c.l.b16 %v294
        %v337 = vpack.c.b16 %v330, %v329
        %v338 = vpack.c.b16 %v332, %v331
        %v339 = vpack.c.b16 %v334, %v333
        %v340 = vpack.c.b16 %v336, %v335
        %v345 = vunpack.c.l.b16 %v295
        %v346 = vunpack.c.h.b16 %v295
        %v347 = vunpack.c.l.b16 %v296
        %v348 = vunpack.c.h.b16 %v296
        %v349 = vunpack.c.l.b16 %v297
        %v350 = vunpack.c.h.b16 %v297
        %v351 = vunpack.c.l.b16 %v298
        %v352 = vunpack.c.h.b16 %v298
        %v353 = vpack.c.b16 %v349, %v345
        %v354 = vpack.c.b16 %v350, %v346
        %v355 = vpack.c.b16 %v351, %v347
        %v356 = vpack.c.b16 %v352, %v348
        %vm361 = vcmask 130048
        %v363 = vsel %vm361, %v337, 0
        %v366 = vsel %vm361, %v338, 0
        %v369 = vsel %vm361, %v339, 0
        %v372 = vsel %vm361, %v340, 0
        %374 = vmatprep.subr.bf16.mxu0 %v354
        %375 = vmatpush1.bf16.msra.mxu0 %v353
        %376 = vmatprep.subr.bf16.mxu0 0
        %377 = vmatpush1.bf16.msra.mxu0 0
        %378 = vmatprep.subr.bf16.mxu0 0
        %379 = vmatpush1.bf16.msra.mxu0 0
        %380 = vmatprep.subr.bf16.mxu0 0
        %381 = vmatpush1.bf16.msra.mxu0 0
        %382 = vmatprep.subr.bf16.mxu0 0
        %383 = vmatpush1.bf16.msra.mxu0 0
        %384 = vmatprep.subr.bf16.mxu0 0
        %385 = vmatpush1.bf16.msra.mxu0 0
        %386 = vmatprep.subr.bf16.mxu0 0
        %387 = vmatpush1.bf16.msra.mxu0 0
        %388 = vmatprep.subr.bf16.mxu0 0
        %389 = vmatpush1.bf16.msra.mxu0 0
        %390 = vmatprep.subr.bf16.mxu0 0
        %391 = vmatpush1.bf16.msra.mxu0 0
        %392 = vmatprep.subr.bf16.mxu0 0
        %393 = vmatpush1.bf16.msra.mxu0 0
        %394 = vmatprep.subr.bf16.mxu0 0
        %395 = vmatpush1.bf16.msra.mxu0 0
        %396 = vmatprep.subr.bf16.mxu0 0
        %397 = vmatpush1.bf16.msra.mxu0 0
        %398 = vmatprep.subr.bf16.mxu0 0
        %399 = vmatpush1.bf16.msra.mxu0 0
        %400 = vmatprep.subr.bf16.mxu0 0
        %401 = vmatpush1.bf16.msra.mxu0 0
        %402 = vmatprep.subr.bf16.mxu0 0
        %403 = vmatpush1.bf16.msra.mxu0 0
        %404 = vmatprep.subr.bf16.mxu0 0
        %405 = vmatpush1.bf16.msra.mxu0 0
        %406 = vmatprep.mubr.bf16.mxu0 0
        %407 = vmatmul.mubr.bf16.gmra.mrb[0].mxu0 %v363
        %v408 = vpop.f32.mrb[0].mxu0
        %v409 = vadd.f32 %v304, %v408
        %v410 = vpop.f32.mrb[0].mxu0
        %v411 = vadd.f32 %v308, %v410
        %v412 = vpop.f32.mrb[0].mxu0
        %v413 = vadd.f32 %v304, %v412
        %v414 = vpop.f32.mrb[0].mxu0
        %v415 = vadd.f32 %v308, %v414
        %416 = vmatprep.mubr.bf16.mxu0 0
        %417 = vmatmul.mubr.bf16.gmra.mrb[0].mxu0 %v366
        %v418 = vpop.f32.mrb[0].mxu0
        %v419 = vadd.f32 %v304, %v418
        %v420 = vpop.f32.mrb[0].mxu0
        %v421 = vadd.f32 %v308, %v420
        %v422 = vpop.f32.mrb[0].mxu0
        %v423 = vadd.f32 %v304, %v422
        %v424 = vpop.f32.mrb[0].mxu0
        %v425 = vadd.f32 %v308, %v424
        %426 = vmatprep.mubr.bf16.mxu0 0
        %427 = vmatmul.mubr.bf16.gmra.mrb[0].mxu0 %v369
        %v428 = vpop.f32.mrb[0].mxu0
        %v429 = vadd.f32 %v304, %v428
        %v430 = vpop.f32.mrb[0].mxu0
        %v431 = vadd.f32 %v308, %v430
        %v432 = vpop.f32.mrb[0].mxu0
        %v433 = vadd.f32 %v304, %v432
        %v434 = vpop.f32.mrb[0].mxu0
        %v435 = vadd.f32 %v308, %v434
        %436 = vmatprep.mubr.bf16.mxu0 0
        %437 = vmatmul.mubr.bf16.gmra.mrb[0].mxu0 %v372
        %v438 = vpop.f32.mrb[0].mxu0
        %v439 = vadd.f32 %v304, %v438
        %v440 = vpop.f32.mrb[0].mxu0
        %v441 = vadd.f32 %v308, %v440
        %v442 = vpop.f32.mrb[0].mxu0
        %v443 = vadd.f32 %v304, %v442
        %v444 = vpop.f32.mrb[0].mxu0
        %v445 = vadd.f32 %v308, %v444
        %446 = vdwg.mxu0
        %447 = vmatprep.subr.bf16.mxu0 %v356
        %448 = vmatpush1.bf16.msra.mxu0 %v355
        %449 = vmatprep.subr.bf16.mxu0 0
        %450 = vmatpush1.bf16.msra.mxu0 0
        %451 = vmatprep.subr.bf16.mxu0 0
        %452 = vmatpush1.bf16.msra.mxu0 0
        %453 = vmatprep.subr.bf16.mxu0 0
        %454 = vmatpush1.bf16.msra.mxu0 0
        %455 = vmatprep.subr.bf16.mxu0 0
        %456 = vmatpush1.bf16.msra.mxu0 0
        %457 = vmatprep.subr.bf16.mxu0 0
        %458 = vmatpush1.bf16.msra.mxu0 0
        %459 = vmatprep.subr.bf16.mxu0 0
        %460 = vmatpush1.bf16.msra.mxu0 0
        %461 = vmatprep.subr.bf16.mxu0 0
        %462 = vmatpush1.bf16.msra.mxu0 0
        %463 = vmatprep.subr.bf16.mxu0 0
        %464 = vmatpush1.bf16.msra.mxu0 0
        %465 = vmatprep.subr.bf16.mxu0 0
        %466 = vmatpush1.bf16.msra.mxu0 0
        %467 = vmatprep.subr.bf16.mxu0 0
        %468 = vmatpush1.bf16.msra.mxu0 0
        %469 = vmatprep.subr.bf16.mxu0 0
        %470 = vmatpush1.bf16.msra.mxu0 0
        %471 = vmatprep.subr.bf16.mxu0 0
        %472 = vmatpush1.bf16.msra.mxu0 0
        %473 = vmatprep.subr.bf16.mxu0 0
        %474 = vmatpush1.bf16.msra.mxu0 0
        %475 = vmatprep.subr.bf16.mxu0 0
        %476 = vmatpush1.bf16.msra.mxu0 0
        %477 = vmatprep.subr.bf16.mxu0 0
        %478 = vmatpush1.bf16.msra.mxu0 0
        %479 = vmatprep.mubr.bf16.mxu0 0
        %480 = vmatmul.mubr.bf16.gmra.mrb[0].mxu0 %v363
        %v481 = vpop.f32.mrb[0].mxu0
        %v482 = vadd.f32 %v312, %v481
        %v483 = vpop.f32.mrb[0].mxu0
        %v484 = vadd.f32 %v316, %v483
        %v485 = vpop.f32.mrb[0].mxu0
        %v486 = vadd.f32 %v312, %v485
        %v487 = vpop.f32.mrb[0].mxu0
        %v488 = vadd.f32 %v316, %v487
        %489 = vmatprep.mubr.bf16.mxu0 0
        %490 = vmatmul.mubr.bf16.gmra.mrb[0].mxu0 %v366
        %v491 = vpop.f32.mrb[0].mxu0
        %v492 = vadd.f32 %v312, %v491
        %v493 = vpop.f32.mrb[0].mxu0
        %v494 = vadd.f32 %v316, %v493
        %v495 = vpop.f32.mrb[0].mxu0
        %v496 = vadd.f32 %v312, %v495
        %v497 = vpop.f32.mrb[0].mxu0
        %v498 = vadd.f32 %v316, %v497
        %499 = vmatprep.mubr.bf16.mxu0 0
        %500 = vmatmul.mubr.bf16.gmra.mrb[0].mxu0 %v369
        %v501 = vpop.f32.mrb[0].mxu0
        %v502 = vadd.f32 %v312, %v501
        %v503 = vpop.f32.mrb[0].mxu0
        %v504 = vadd.f32 %v316, %v503
        %v505 = vpop.f32.mrb[0].mxu0
        %v506 = vadd.f32 %v312, %v505
        %v507 = vpop.f32.mrb[0].mxu0
        %v508 = vadd.f32 %v316, %v507
        %509 = vmatprep.mubr.bf16.mxu0 0
        %510 = vmatmul.mubr.bf16.gmra.mrb[0].mxu0 %v372
        %v511 = vpop.f32.mrb[0].mxu0
        %v512 = vadd.f32 %v312, %v511
        %v513 = vpop.f32.mrb[0].mxu0
        %v514 = vadd.f32 %v316, %v513
        %v515 = vpop.f32.mrb[0].mxu0
        %v516 = vadd.f32 %v312, %v515
        %v517 = vpop.f32.mrb[0].mxu0
        %v518 = vadd.f32 %v316, %v517
        %519 = vdwg.mxu0
        %520 = vst [vmem:[#allocation4] sm:$0xff] %v409
        %521 = vst [vmem:[#allocation4 + $0x8] sm:$0xff] %v411
        %522 = vst [vmem:[#allocation4 + $0x10] sm:$0xff] %v482
        %523 = vst [vmem:[#allocation4 + $0x18] sm:$0xff] %v484
        %524 = vst [vmem:[#allocation4 + $0x20] sm:$0xff] %v413
        %525 = vst [vmem:[#allocation4 + $0x28] sm:$0xff] %v415
        %526 = vst [vmem:[#allocation4 + $0x30] sm:$0xff] %v486
        %527 = vst [vmem:[#allocation4 + $0x38] sm:$0xff] %v488
        %528 = vst [vmem:[#allocation4 + $0x40] sm:$0xff] %v419
        %529 = vst [vmem:[#allocation4 + $0x48] sm:$0xff] %v421
        %530 = vst [vmem:[#allocation4 + $0x50] sm:$0xff] %v492
        %531 = vst [vmem:[#allocation4 + $0x58] sm:$0xff] %v494
        %532 = vst [vmem:[#allocation4 + $0x60] sm:$0xff] %v423
        %533 = vst [vmem:[#allocation4 + $0x68] sm:$0xff] %v425
        %534 = vst [vmem:[#allocation4 + $0x70] sm:$0xff] %v496
        %535 = vst [vmem:[#allocation4 + $0x78] sm:$0xff] %v498
        %536 = vst [vmem:[#allocation4 + $0x80] sm:$0xff] %v429
        %537 = vst [vmem:[#allocation4 + $0x88] sm:$0xff] %v431
        %538 = vst [vmem:[#allocation4 + $0x90] sm:$0xff] %v502
        %539 = vst [vmem:[#allocation4 + $0x98] sm:$0xff] %v504
        %540 = vst [vmem:[#allocation4 + $0xa0] sm:$0xff] %v433
        %541 = vst [vmem:[#allocation4 + $0xa8] sm:$0xff] %v435
        %542 = vst [vmem:[#allocation4 + $0xb0] sm:$0xff] %v506
        %543 = vst [vmem:[#allocation4 + $0xb8] sm:$0xff] %v508
        %544 = vst [vmem:[#allocation4 + $0xc0] sm:$0xff] %v439
        %545 = vst [vmem:[#allocation4 + $0xc8] sm:$0xff] %v441
        %546 = vst [vmem:[#allocation4 + $0xd0] sm:$0xff] %v512
        %547 = vst [vmem:[#allocation4 + $0xd8] sm:$0xff] %v514
        %548 = vst [vmem:[#allocation4 + $0xe0] sm:$0xff] %v443
        %549 = vst [vmem:[#allocation4 + $0xe8] sm:$0xff] %v445
        %550 = vst [vmem:[#allocation4 + $0xf0] sm:$0xff] %v516
        %551 = vst [vmem:[#allocation4 + $0xf8] sm:$0xff] %v518
        %v552 = vld [vmem:[#allocation9] sm:$0xff]
        %v553 = vld [vmem:[#allocation9 + $0x8] sm:$0xff]
        %v554 = vld [vmem:[#allocation9 + $0x10] sm:$0xff]
        %v555 = vld [vmem:[#allocation9 + $0x18] sm:$0xff]
        %v556 = vld [vmem:[#allocation9 + $0x20] sm:$0xff]
        %v557 = vld [vmem:[#allocation9 + $0x28] sm:$0xff]
        %v558 = vld [vmem:[#allocation9 + $0x30] sm:$0xff]
        %v559 = vld [vmem:[#allocation9 + $0x38] sm:$0xff]
        %v560 = vld [vmem:[#allocation9 + $0x40] sm:$0xff]
        %v561 = vld [vmem:[#allocation9 + $0x48] sm:$0xff]
        %v562 = vld [vmem:[#allocation9 + $0x50] sm:$0xff]
        %v563 = vld [vmem:[#allocation9 + $0x58] sm:$0xff]
        %v564 = vld [vmem:[#allocation9 + $0x60] sm:$0xff]
        %v565 = vld [vmem:[#allocation9 + $0x68] sm:$0xff]
        %v566 = vld [vmem:[#allocation9 + $0x70] sm:$0xff]
        %v567 = vld [vmem:[#allocation9 + $0x78] sm:$0xff]
        %v568 = vld [vmem:[#allocation9 + $0x80] sm:$0xff]
        %v569 = vld [vmem:[#allocation9 + $0x88] sm:$0xff]
        %v570 = vld [vmem:[#allocation9 + $0x90] sm:$0xff]
        %v571 = vld [vmem:[#allocation9 + $0x98] sm:$0xff]
        %v572 = vld [vmem:[#allocation9 + $0xa0] sm:$0xff]
        %v573 = vld [vmem:[#allocation9 + $0xa8] sm:$0xff]
        %v574 = vld [vmem:[#allocation9 + $0xb0] sm:$0xff]
        %v575 = vld [vmem:[#allocation9 + $0xb8] sm:$0xff]
        %v576 = vld [vmem:[#allocation9 + $0xc0] sm:$0xff]
        %v577 = vld [vmem:[#allocation9 + $0xc8] sm:$0xff]
        %v578 = vld [vmem:[#allocation9 + $0xd0] sm:$0xff]
        %v579 = vld [vmem:[#allocation9 + $0xd8] sm:$0xff]
        %v580 = vld [vmem:[#allocation9 + $0xe0] sm:$0xff]
        %v581 = vld [vmem:[#allocation9 + $0xe8] sm:$0xff]
        %v582 = vld [vmem:[#allocation9 + $0xf0] sm:$0xff]
        %v583 = vld [vmem:[#allocation9 + $0xf8] sm:$0xff]
        %v584 = vld [vmem:[#allocation2] sm:$0xff]
        %v585 = vld [vmem:[#allocation3] sm:$0xff]
        %s586 = smul.u32 0, 4
        %s587 = smul.addr %s586, 8
        %s588 = scalar_lea.vmem [#allocation4], %s587
        %v589 = vld [vmem:[%s588] sm:$0xff]
        %v590 = vld [vmem:[%s588 + $0x8] sm:$0xff]
        %v591 = vld [vmem:[%s588 + $0x10] sm:$0xff]
        %v592 = vld [vmem:[%s588 + $0x18] sm:$0xff]
        %v593 = vpack.c.bf16 %v584, %v584
        %v626 = vunpack.c.l.b16 %v552
        %v627 = vunpack.c.h.b16 %v552
        %v628 = vunpack.c.l.b16 %v553
        %v629 = vunpack.c.h.b16 %v553
        %v630 = vunpack.c.l.b16 %v554
        %v631 = vunpack.c.h.b16 %v554
        %v632 = vunpack.c.l.b16 %v555
        %v633 = vunpack.c.h.b16 %v555
        %v634 = vunpack.c.l.b16 %v556
        %v635 = vunpack.c.h.b16 %v556
        %v636 = vunpack.c.l.b16 %v557
        %v637 = vunpack.c.h.b16 %v557
        %v638 = vunpack.c.l.b16 %v558
        %v639 = vunpack.c.h.b16 %v558
        %v640 = vunpack.c.l.b16 %v559
        %v641 = vunpack.c.h.b16 %v559
        %v642 = vunpack.c.l.b16 %v560
        %v643 = vunpack.c.h.b16 %v560
        %v644 = vunpack.c.l.b16 %v561
        %v645 = vunpack.c.h.b16 %v561
        %v646 = vunpack.c.l.b16 %v562
        %v647 = vunpack.c.h.b16 %v562
        %v648 = vunpack.c.l.b16 %v563
        %v649 = vunpack.c.h.b16 %v563
        %v650 = vunpack.c.l.b16 %v564
        %v651 = vunpack.c.h.b16 %v564
        %v652 = vunpack.c.l.b16 %v565
        %v653 = vunpack.c.h.b16 %v565
        %v654 = vunpack.c.l.b16 %v566
        %v655 = vunpack.c.h.b16 %v566
        %v656 = vunpack.c.l.b16 %v567
        %v657 = vunpack.c.h.b16 %v567
        %v658 = vunpack.c.l.b16 %v568
        %v659 = vunpack.c.h.b16 %v568
        %v660 = vunpack.c.l.b16 %v569
        %v661 = vunpack.c.h.b16 %v569
        %v662 = vunpack.c.l.b16 %v570
        %v663 = vunpack.c.h.b16 %v570
        %v664 = vunpack.c.l.b16 %v571
        %v665 = vunpack.c.h.b16 %v571
        %v666 = vunpack.c.l.b16 %v572
        %v667 = vunpack.c.h.b16 %v572
        %v668 = vunpack.c.l.b16 %v573
        %v669 = vunpack.c.h.b16 %v573
        %v670 = vunpack.c.l.b16 %v574
        %v671 = vunpack.c.h.b16 %v574
        %v672 = vunpack.c.l.b16 %v575
        %v673 = vunpack.c.h.b16 %v575
        %v674 = vunpack.c.l.b16 %v576
        %v675 = vunpack.c.h.b16 %v576
        %v676 = vunpack.c.l.b16 %v577
        %v677 = vunpack.c.h.b16 %v577
        %v678 = vunpack.c.l.b16 %v578
        %v679 = vunpack.c.h.b16 %v578
        %v680 = vunpack.c.l.b16 %v579
        %v681 = vunpack.c.h.b16 %v579
        %v682 = vunpack.c.l.b16 %v580
        %v683 = vunpack.c.h.b16 %v580
        %v684 = vunpack.c.l.b16 %v581
        %v685 = vunpack.c.h.b16 %v581
        %v686 = vunpack.c.l.b16 %v582
        %v687 = vunpack.c.h.b16 %v582
        %v688 = vunpack.c.l.b16 %v583
        %v689 = vunpack.c.h.b16 %v583
        %v690 = vpack.c.b16 %v630, %v626
        %v691 = vpack.c.b16 %v631, %v627
        %v692 = vpack.c.b16 %v632, %v628
        %v693 = vpack.c.b16 %v633, %v629
        %v694 = vpack.c.b16 %v638, %v634
        %v695 = vpack.c.b16 %v639, %v635
        %v696 = vpack.c.b16 %v640, %v636
        %v697 = vpack.c.b16 %v641, %v637
        %v698 = vpack.c.b16 %v646, %v642
        %v699 = vpack.c.b16 %v647, %v643
        %v700 = vpack.c.b16 %v648, %v644
        %v701 = vpack.c.b16 %v649, %v645
        %v702 = vpack.c.b16 %v654, %v650
        %v703 = vpack.c.b16 %v655, %v651
        %v704 = vpack.c.b16 %v656, %v652
        %v705 = vpack.c.b16 %v657, %v653
        %v706 = vpack.c.b16 %v662, %v658
        %v707 = vpack.c.b16 %v663, %v659
        %v708 = vpack.c.b16 %v664, %v660
        %v709 = vpack.c.b16 %v665, %v661
        %v710 = vpack.c.b16 %v670, %v666
        %v711 = vpack.c.b16 %v671, %v667
        %v712 = vpack.c.b16 %v672, %v668
        %v713 = vpack.c.b16 %v673, %v669
        %v714 = vpack.c.b16 %v678, %v674
        %v715 = vpack.c.b16 %v679, %v675
        %v716 = vpack.c.b16 %v680, %v676
        %v717 = vpack.c.b16 %v681, %v677
        %v718 = vpack.c.b16 %v686, %v682
        %v719 = vpack.c.b16 %v687, %v683
        %v720 = vpack.c.b16 %v688, %v684
        %v721 = vpack.c.b16 %v689, %v685
        %754 = vmatprep.subr.bf16.mxu0 %v691
        %755 = vmatpush1.bf16.msra.mxu0 %v690
        %756 = vmatprep.subr.bf16.mxu0 %v695
        %757 = vmatpush1.bf16.msra.mxu0 %v694
        %758 = vmatprep.subr.bf16.mxu0 %v699
        %759 = vmatpush1.bf16.msra.mxu0 %v698
        %760 = vmatprep.subr.bf16.mxu0 %v703
        %761 = vmatpush1.bf16.msra.mxu0 %v702
        %762 = vmatprep.subr.bf16.mxu0 %v707
        %763 = vmatpush1.bf16.msra.mxu0 %v706
        %764 = vmatprep.subr.bf16.mxu0 %v711
        %765 = vmatpush1.bf16.msra.mxu0 %v710
        %766 = vmatprep.subr.bf16.mxu0 %v715
        %767 = vmatpush1.bf16.msra.mxu0 %v714
        %768 = vmatprep.subr.bf16.mxu0 %v719
        %769 = vmatpush1.bf16.msra.mxu0 %v718
        %770 = vmatprep.subr.bf16.mxu0 0
        %771 = vmatpush1.bf16.msra.mxu0 0
        %772 = vmatprep.subr.bf16.mxu0 0
        %773 = vmatpush1.bf16.msra.mxu0 0
        %774 = vmatprep.subr.bf16.mxu0 0
        %775 = vmatpush1.bf16.msra.mxu0 0
        %776 = vmatprep.subr.bf16.mxu0 0
        %777 = vmatpush1.bf16.msra.mxu0 0
        %778 = vmatprep.subr.bf16.mxu0 0
        %779 = vmatpush1.bf16.msra.mxu0 0
        %780 = vmatprep.subr.bf16.mxu0 0
        %781 = vmatpush1.bf16.msra.mxu0 0
        %782 = vmatprep.subr.bf16.mxu0 0
        %783 = vmatpush1.bf16.msra.mxu0 0
        %784 = vmatprep.subr.bf16.mxu0 0
        %785 = vmatpush1.bf16.msra.mxu0 0
        %786 = vmatprep.mubr.bf16.mxu0 0
        %787 = vmatmul.mubr.bf16.gmra.mrb[0].mxu0 %v593
        %v788 = vpop.f32.mrb[0].mxu0
        %v789 = vadd.f32 0.0, %v788
        %v790 = vpop.f32.mrb[0].mxu0
        %v791 = vadd.f32 0.0, %v790
        %v792 = vpop.f32.mrb[0].mxu0
        %v793 = vpop.f32.mrb[0].mxu0
        %794 = vdwg.mxu0
        %795 = vmatprep.subr.bf16.mxu0 %v693
        %796 = vmatpush1.bf16.msra.mxu0 %v692
        %797 = vmatprep.subr.bf16.mxu0 %v697
        %798 = vmatpush1.bf16.msra.mxu0 %v696
        %799 = vmatprep.subr.bf16.mxu0 %v701
        %800 = vmatpush1.bf16.msra.mxu0 %v700
        %801 = vmatprep.subr.bf16.mxu0 %v705
        %802 = vmatpush1.bf16.msra.mxu0 %v704
        %803 = vmatprep.subr.bf16.mxu0 %v709
        %804 = vmatpush1.bf16.msra.mxu0 %v708
        %805 = vmatprep.subr.bf16.mxu0 %v713
        %806 = vmatpush1.bf16.msra.mxu0 %v712
        %807 = vmatprep.subr.bf16.mxu0 %v717
        %808 = vmatpush1.bf16.msra.mxu0 %v716
        %809 = vmatprep.subr.bf16.mxu0 %v721
        %810 = vmatpush1.bf16.msra.mxu0 %v720
        %811 = vmatprep.subr.bf16.mxu0 0
        %812 = vmatpush1.bf16.msra.mxu0 0
        %813 = vmatprep.subr.bf16.mxu0 0
        %814 = vmatpush1.bf16.msra.mxu0 0
        %815 = vmatprep.subr.bf16.mxu0 0
        %816 = vmatpush1.bf16.msra.mxu0 0
        %817 = vmatprep.subr.bf16.mxu0 0
        %818 = vmatpush1.bf16.msra.mxu0 0
        %819 = vmatprep.subr.bf16.mxu0 0
        %820 = vmatpush1.bf16.msra.mxu0 0
        %821 = vmatprep.subr.bf16.mxu0 0
        %822 = vmatpush1.bf16.msra.mxu0 0
        %823 = vmatprep.subr.bf16.mxu0 0
        %824 = vmatpush1.bf16.msra.mxu0 0
        %825 = vmatprep.subr.bf16.mxu0 0
        %826 = vmatpush1.bf16.msra.mxu0 0
        %827 = vmatprep.mubr.bf16.mxu0 0
        %828 = vmatmul.mubr.bf16.gmra.mrb[0].mxu0 %v593
        %v829 = vpop.f32.mrb[0].mxu0
        %v830 = vadd.f32 0.0, %v829
        %v831 = vpop.f32.mrb[0].mxu0
        %v832 = vadd.f32 0.0, %v831
        %v833 = vpop.f32.mrb[0].mxu0
        %v834 = vpop.f32.mrb[0].mxu0
        %835 = vdwg.mxu0
        %v836 = vadd.f32 %v589, %v789
        %v837 = vadd.f32 %v590, %v791
        %v838 = vadd.f32 %v591, %v830
        %v839 = vadd.f32 %v592, %v832
        %v840 = vxor.u32 %v836, 2147483648
        %v841 = vmul.f32 %v840, 1.442695
        %v842 = vpow.pop %v841
        %v843 = vadd.f32 %v842, 1.0
        %v844 = vrcp.pop %v843
        %v845 = vmul.f32 1.0, %v844
        %v846 = vxor.u32 %v837, 2147483648
        %v847 = vmul.f32 %v846, 1.442695
        %v848 = vpow.pop %v847
        %v849 = vadd.f32 %v848, 1.0
        %v850 = vrcp.pop %v849
        %v851 = vmul.f32 1.0, %v850
        %v852 = vtanh.pop %v838
        %v853 = vxor.u32 %v839, 2147483648
        %v854 = vmul.f32 %v853, 1.442695
        %v855 = vpow.pop %v854
        %v856 = vadd.f32 %v855, 1.0
        %v857 = vrcp.pop %v856
        %v858 = vmul.f32 1.0, %v857
        %v859 = vmul.f32 %v851, %v585
        %v860 = vmul.f32 %v845, %v852
        %v861 = vadd.f32 %v859, %v860
        %v862 = vtanh.pop %v861
        %v863 = vmul.f32 %v858, %v862
        %864 = vst [vmem:[#allocation5] sm:$0xff] %v863
        %s865 = smul.u32 1, 4
        %s866 = smul.addr %s865, 8
        %s867 = scalar_lea.vmem [#allocation4], %s866
        %v868 = vld [vmem:[%s867] sm:$0xff]
        %v869 = vld [vmem:[%s867 + $0x8] sm:$0xff]
        %v870 = vld [vmem:[%s867 + $0x10] sm:$0xff]
        %v871 = vld [vmem:[%s867 + $0x18] sm:$0xff]
        %v872 = vpack.c.bf16 %v863, %v863
        %873 = vmatprep.subr.bf16.mxu0 %v691
        %874 = vmatpush1.bf16.msra.mxu0 %v690
        %875 = vmatprep.subr.bf16.mxu0 %v695
        %876 = vmatpush1.bf16.msra.mxu0 %v694
        %877 = vmatprep.subr.bf16.mxu0 %v699
        %878 = vmatpush1.bf16.msra.mxu0 %v698
        %879 = vmatprep.subr.bf16.mxu0 %v703
        %880 = vmatpush1.bf16.msra.mxu0 %v702
        %881 = vmatprep.subr.bf16.mxu0 %v707
        %882 = vmatpush1.bf16.msra.mxu0 %v706
        %883 = vmatprep.subr.bf16.mxu0 %v711
        %884 = vmatpush1.bf16.msra.mxu0 %v710
        %885 = vmatprep.subr.bf16.mxu0 %v715
        %886 = vmatpush1.bf16.msra.mxu0 %v714
        %887 = vmatprep.subr.bf16.mxu0 %v719
        %888 = vmatpush1.bf16.msra.mxu0 %v718
        %889 = vmatprep.subr.bf16.mxu0 0
        %890 = vmatpush1.bf16.msra.mxu0 0
        %891 = vmatprep.subr.bf16.mxu0 0
        %892 = vmatpush1.bf16.msra.mxu0 0
        %893 = vmatprep.subr.bf16.mxu0 0
        %894 = vmatpush1.bf16.msra.mxu0 0
        %895 = vmatprep.subr.bf16.mxu0 0
        %896 = vmatpush1.bf16.msra.mxu0 0
        %897 = vmatprep.subr.bf16.mxu0 0
        %898 = vmatpush1.bf16.msra.mxu0 0
        %899 = vmatprep.subr.bf16.mxu0 0
        %900 = vmatpush1.bf16.msra.mxu0 0
        %901 = vmatprep.subr.bf16.mxu0 0
        %902 = vmatpush1.bf16.msra.mxu0 0
        %903 = vmatprep.subr.bf16.mxu0 0
        %904 = vmatpush1.bf16.msra.mxu0 0
        %905 = vmatprep.mubr.bf16.mxu0 0
        %906 = vmatmul.mubr.bf16.gmra.mrb[0].mxu0 %v872
        %v907 = vpop.f32.mrb[0].mxu0
        %v908 = vadd.f32 0.0, %v907
        %v909 = vpop.f32.mrb[0].mxu0
        %v910 = vadd.f32 0.0, %v909
        %v911 = vpop.f32.mrb[0].mxu0
        %v912 = vpop.f32.mrb[0].mxu0
        %913 = vdwg.mxu0
        %914 = vmatprep.subr.bf16.mxu0 %v693
        %915 = vmatpush1.bf16.msra.mxu0 %v692
        %916 = vmatprep.subr.bf16.mxu0 %v697
        %917 = vmatpush1.bf16.msra.mxu0 %v696
        %918 = vmatprep.subr.bf16.mxu0 %v701
        %919 = vmatpush1.bf16.msra.mxu0 %v700
        %920 = vmatprep.subr.bf16.mxu0 %v705
        %921 = vmatpush1.bf16.msra.mxu0 %v704
        %922 = vmatprep.subr.bf16.mxu0 %v709
        %923 = vmatpush1.bf16.msra.mxu0 %v708
        %924 = vmatprep.subr.bf16.mxu0 %v713
        %925 = vmatpush1.bf16.msra.mxu0 %v712
        %926 = vmatprep.subr.bf16.mxu0 %v717
        %927 = vmatpush1.bf16.msra.mxu0 %v716
        %928 = vmatprep.subr.bf16.mxu0 %v721
        %929 = vmatpush1.bf16.msra.mxu0 %v720
        %930 = vmatprep.subr.bf16.mxu0 0
        %931 = vmatpush1.bf16.msra.mxu0 0
        %932 = vmatprep.subr.bf16.mxu0 0
        %933 = vmatpush1.bf16.msra.mxu0 0
        %934 = vmatprep.subr.bf16.mxu0 0
        %935 = vmatpush1.bf16.msra.mxu0 0
        %936 = vmatprep.subr.bf16.mxu0 0
        %937 = vmatpush1.bf16.msra.mxu0 0
        %938 = vmatprep.subr.bf16.mxu0 0
        %939 = vmatpush1.bf16.msra.mxu0 0
        %940 = vmatprep.subr.bf16.mxu0 0
        %941 = vmatpush1.bf16.msra.mxu0 0
        %942 = vmatprep.subr.bf16.mxu0 0
        %943 = vmatpush1.bf16.msra.mxu0 0
        %944 = vmatprep.subr.bf16.mxu0 0
        %945 = vmatpush1.bf16.msra.mxu0 0
        %946 = vmatprep.mubr.bf16.mxu0 0
        %947 = vmatmul.mubr.bf16.gmra.mrb[0].mxu0 %v872
        %v948 = vpop.f32.mrb[0].mxu0
        %v949 = vadd.f32 0.0, %v948
        %v950 = vpop.f32.mrb[0].mxu0
        %v951 = vadd.f32 0.0, %v950
        %v952 = vpop.f32.mrb[0].mxu0
        %v953 = vpop.f32.mrb[0].mxu0
        %954 = vdwg.mxu0
        %v955 = vadd.f32 %v868, %v908
        %v956 = vadd.f32 %v869, %v910
        %v957 = vadd.f32 %v870, %v949
        %v958 = vadd.f32 %v871, %v951
        %v959 = vxor.u32 %v955, 2147483648
        %v960 = vmul.f32 %v959, 1.442695
        %v961 = vpow.pop %v960
        %v962 = vadd.f32 %v961, 1.0
        %v963 = vrcp.pop %v962
        %v964 = vmul.f32 1.0, %v963
        %v965 = vxor.u32 %v956, 2147483648
        %v966 = vmul.f32 %v965, 1.442695
        %v967 = vpow.pop %v966
        %v968 = vadd.f32 %v967, 1.0
        %v969 = vrcp.pop %v968
        %v970 = vmul.f32 1.0, %v969
        %v971 = vtanh.pop %v957
        %v972 = vxor.u32 %v958, 2147483648
        %v973 = vmul.f32 %v972, 1.442695
        %v974 = vpow.pop %v973
        %v975 = vadd.f32 %v974, 1.0
        %v976 = vrcp.pop %v975
        %v977 = vmul.f32 1.0, %v976
        %v978 = vmul.f32 %v970, %v861
        %v979 = vmul.f32 %v964, %v971
        %v980 = vadd.f32 %v978, %v979
        %v981 = vtanh.pop %v980
        %v982 = vmul.f32 %v977, %v981
        %s983 = scalar_lea.vmem [#allocation5], 8
        %984 = vst [vmem:[%s983] sm:$0xff] %v982
        %s985 = smul.u32 2, 4
        %s986 = smul.addr %s985, 8
        %s987 = scalar_lea.vmem [#allocation4], %s986
        %v988 = vld [vmem:[%s987] sm:$0xff]
        %v989 = vld [vmem:[%s987 + $0x8] sm:$0xff]
        %v990 = vld [vmem:[%s987 + $0x10] sm:$0xff]
        %v991 = vld [vmem:[%s987 + $0x18] sm:$0xff]
        %v992 = vpack.c.bf16 %v982, %v982
        %993 = vmatprep.subr.bf16.mxu0 %v691
        %994 = vmatpush1.bf16.msra.mxu0 %v690
        %995 = vmatprep.subr.bf16.mxu0 %v695
        %996 = vmatpush1.bf16.msra.mxu0 %v694
        %997 = vmatprep.subr.bf16.mxu0 %v699
        %998 = vmatpush1.bf16.msra.mxu0 %v698
        %999 = vmatprep.subr.bf16.mxu0 %v703
        %1000 = vmatpush1.bf16.msra.mxu0 %v702
        %1001 = vmatprep.subr.bf16.mxu0 %v707
        %1002 = vmatpush1.bf16.msra.mxu0 %v706
        %1003 = vmatprep.subr.bf16.mxu0 %v711
        %1004 = vmatpush1.bf16.msra.mxu0 %v710
        %1005 = vmatprep.subr.bf16.mxu0 %v715
        %1006 = vmatpush1.bf16.msra.mxu0 %v714
        %1007 = vmatprep.subr.bf16.mxu0 %v719
        %1008 = vmatpush1.bf16.msra.mxu0 %v718
        %1009 = vmatprep.subr.bf16.mxu0 0
        %1010 = vmatpush1.bf16.msra.mxu0 0
        %1011 = vmatprep.subr.bf16.mxu0 0
        %1012 = vmatpush1.bf16.msra.mxu0 0
        %1013 = vmatprep.subr.bf16.mxu0 0
        %1014 = vmatpush1.bf16.msra.mxu0 0
        %1015 = vmatprep.subr.bf16.mxu0 0
        %1016 = vmatpush1.bf16.msra.mxu0 0
        %1017 = vmatprep.subr.bf16.mxu0 0
        %1018 = vmatpush1.bf16.msra.mxu0 0
        %1019 = vmatprep.subr.bf16.mxu0 0
        %1020 = vmatpush1.bf16.msra.mxu0 0
        %1021 = vmatprep.subr.bf16.mxu0 0
        %1022 = vmatpush1.bf16.msra.mxu0 0
        %1023 = vmatprep.subr.bf16.mxu0 0
        %1024 = vmatpush1.bf16.msra.mxu0 0
        %1025 = vmatprep.mubr.bf16.mxu0 0
        %1026 = vmatmul.mubr.bf16.gmra.mrb[0].mxu0 %v992
        %v1027 = vpop.f32.mrb[0].mxu0
        %v1028 = vadd.f32 0.0, %v1027
        %v1029 = vpop.f32.mrb[0].mxu0
        %v1030 = vadd.f32 0.0, %v1029
        %v1031 = vpop.f32.mrb[0].mxu0
        %v1032 = vpop.f32.mrb[0].mxu0
        %1033 = vdwg.mxu0
        %1034 = vmatprep.subr.bf16.mxu0 %v693
        %1035 = vmatpush1.bf16.msra.mxu0 %v692
        %1036 = vmatprep.subr.bf16.mxu0 %v697
        %1037 = vmatpush1.bf16.msra.mxu0 %v696
        %1038 = vmatprep.subr.bf16.mxu0 %v701
        %1039 = vmatpush1.bf16.msra.mxu0 %v700
        %1040 = vmatprep.subr.bf16.mxu0 %v705
        %1041 = vmatpush1.bf16.msra.mxu0 %v704
        %1042 = vmatprep.subr.bf16.mxu0 %v709
        %1043 = vmatpush1.bf16.msra.mxu0 %v708
        %1044 = vmatprep.subr.bf16.mxu0 %v713
        %1045 = vmatpush1.bf16.msra.mxu0 %v712
        %1046 = vmatprep.subr.bf16.mxu0 %v717
        %1047 = vmatpush1.bf16.msra.mxu0 %v716
        %1048 = vmatprep.subr.bf16.mxu0 %v721
        %1049 = vmatpush1.bf16.msra.mxu0 %v720
        %1050 = vmatprep.subr.bf16.mxu0 0
        %1051 = vmatpush1.bf16.msra.mxu0 0
        %1052 = vmatprep.subr.bf16.mxu0 0
        %1053 = vmatpush1.bf16.msra.mxu0 0
        %1054 = vmatprep.subr.bf16.mxu0 0
        %1055 = vmatpush1.bf16.msra.mxu0 0
        %1056 = vmatprep.subr.bf16.mxu0 0
        %1057 = vmatpush1.bf16.msra.mxu0 0
        %1058 = vmatprep.subr.bf16.mxu0 0
        %1059 = vmatpush1.bf16.msra.mxu0 0
        %1060 = vmatprep.subr.bf16.mxu0 0
        %1061 = vmatpush1.bf16.msra.mxu0 0
        %1062 = vmatprep.subr.bf16.mxu0 0
        %1063 = vmatpush1.bf16.msra.mxu0 0
        %1064 = vmatprep.subr.bf16.mxu0 0
        %1065 = vmatpush1.bf16.msra.mxu0 0
        %1066 = vmatprep.mubr.bf16.mxu0 0
        %1067 = vmatmul.mubr.bf16.gmra.mrb[0].mxu0 %v992
        %v1068 = vpop.f32.mrb[0].mxu0
        %v1069 = vadd.f32 0.0, %v1068
        %v1070 = vpop.f32.mrb[0].mxu0
        %v1071 = vadd.f32 0.0, %v1070
        %v1072 = vpop.f32.mrb[0].mxu0
        %v1073 = vpop.f32.mrb[0].mxu0
        %1074 = vdwg.mxu0
        %v1075 = vadd.f32 %v988, %v1028
        %v1076 = vadd.f32 %v989, %v1030
        %v1077 = vadd.f32 %v990, %v1069
        %v1078 = vadd.f32 %v991, %v1071
        %v1079 = vxor.u32 %v1075, 2147483648
        %v1080 = vmul.f32 %v1079, 1.442695
        %v1081 = vpow.pop %v1080
        %v1082 = vadd.f32 %v1081, 1.0
        %v1083 = vrcp.pop %v1082
        %v1084 = vmul.f32 1.0, %v1083
        %v1085 = vxor.u32 %v1076, 2147483648
        %v1086 = vmul.f32 %v1085, 1.442695
        %v1087 = vpow.pop %v1086
        %v1088 = vadd.f32 %v1087, 1.0
        %v1089 = vrcp.pop %v1088
        %v1090 = vmul.f32 1.0, %v1089
        %v1091 = vtanh.pop %v1077
        %v1092 = vxor.u32 %v1078, 2147483648
        %v1093 = vmul.f32 %v1092, 1.442695
        %v1094 = vpow.pop %v1093
        %v1095 = vadd.f32 %v1094, 1.0
        %v1096 = vrcp.pop %v1095
        %v1097 = vmul.f32 1.0, %v1096
        %v1098 = vmul.f32 %v1090, %v980
        %v1099 = vmul.f32 %v1084, %v1091
        %v1100 = vadd.f32 %v1098, %v1099
        %v1101 = vtanh.pop %v1100
        %v1102 = vmul.f32 %v1097, %v1101
        %s1103 = scalar_lea.vmem [#allocation5], 16
        %1104 = vst [vmem:[%s1103] sm:$0xff] %v1102
        %s1105 = smul.u32 3, 4
        %s1106 = smul.addr %s1105, 8
        %s1107 = scalar_lea.vmem [#allocation4], %s1106
        %v1108 = vld [vmem:[%s1107] sm:$0xff]
        %v1109 = vld [vmem:[%s1107 + $0x8] sm:$0xff]
        %v1110 = vld [vmem:[%s1107 + $0x10] sm:$0xff]
        %v1111 = vld [vmem:[%s1107 + $0x18] sm:$0xff]
        %v1112 = vpack.c.bf16 %v1102, %v1102
        %1113 = vmatprep.subr.bf16.mxu0 %v691
        %1114 = vmatpush1.bf16.msra.mxu0 %v690
        %1115 = vmatprep.subr.bf16.mxu0 %v695
        %1116 = vmatpush1.bf16.msra.mxu0 %v694
        %1117 = vmatprep.subr.bf16.mxu0 %v699
        %1118 = vmatpush1.bf16.msra.mxu0 %v698
        %1119 = vmatprep.subr.bf16.mxu0 %v703
        %1120 = vmatpush1.bf16.msra.mxu0 %v702
        %1121 = vmatprep.subr.bf16.mxu0 %v707
        %1122 = vmatpush1.bf16.msra.mxu0 %v706
        %1123 = vmatprep.subr.bf16.mxu0 %v711
        %1124 = vmatpush1.bf16.msra.mxu0 %v710
        %1125 = vmatprep.subr.bf16.mxu0 %v715
        %1126 = vmatpush1.bf16.msra.mxu0 %v714
        %1127 = vmatprep.subr.bf16.mxu0 %v719
        %1128 = vmatpush1.bf16.msra.mxu0 %v718
        %1129 = vmatprep.subr.bf16.mxu0 0
        %1130 = vmatpush1.bf16.msra.mxu0 0
        %1131 = vmatprep.subr.bf16.mxu0 0
        %1132 = vmatpush1.bf16.msra.mxu0 0
        %1133 = vmatprep.subr.bf16.mxu0 0
        %1134 = vmatpush1.bf16.msra.mxu0 0
        %1135 = vmatprep.subr.bf16.mxu0 0
        %1136 = vmatpush1.bf16.msra.mxu0 0
        %1137 = vmatprep.subr.bf16.mxu0 0
        %1138 = vmatpush1.bf16.msra.mxu0 0
        %1139 = vmatprep.subr.bf16.mxu0 0
        %1140 = vmatpush1.bf16.msra.mxu0 0
        %1141 = vmatprep.subr.bf16.mxu0 0
        %1142 = vmatpush1.bf16.msra.mxu0 0
        %1143 = vmatprep.subr.bf16.mxu0 0
        %1144 = vmatpush1.bf16.msra.mxu0 0
        %1145 = vmatprep.mubr.bf16.mxu0 0
        %1146 = vmatmul.mubr.bf16.gmra.mrb[0].mxu0 %v1112
        %v1147 = vpop.f32.mrb[0].mxu0
        %v1148 = vadd.f32 0.0, %v1147
        %v1149 = vpop.f32.mrb[0].mxu0
        %v1150 = vadd.f32 0.0, %v1149
        %v1151 = vpop.f32.mrb[0].mxu0
        %v1152 = vpop.f32.mrb[0].mxu0
        %1153 = vdwg.mxu0
        %1154 = vmatprep.subr.bf16.mxu0 %v693
        %1155 = vmatpush1.bf16.msra.mxu0 %v692
        %1156 = vmatprep.subr.bf16.mxu0 %v697
        %1157 = vmatpush1.bf16.msra.mxu0 %v696
        %1158 = vmatprep.subr.bf16.mxu0 %v701
        %1159 = vmatpush1.bf16.msra.mxu0 %v700
        %1160 = vmatprep.subr.bf16.mxu0 %v705
        %1161 = vmatpush1.bf16.msra.mxu0 %v704
        %1162 = vmatprep.subr.bf16.mxu0 %v709
        %1163 = vmatpush1.bf16.msra.mxu0 %v708
        %1164 = vmatprep.subr.bf16.mxu0 %v713
        %1165 = vmatpush1.bf16.msra.mxu0 %v712
        %1166 = vmatprep.subr.bf16.mxu0 %v717
        %1167 = vmatpush1.bf16.msra.mxu0 %v716
        %1168 = vmatprep.subr.bf16.mxu0 %v721
        %1169 = vmatpush1.bf16.msra.mxu0 %v720
        %1170 = vmatprep.subr.bf16.mxu0 0
        %1171 = vmatpush1.bf16.msra.mxu0 0
        %1172 = vmatprep.subr.bf16.mxu0 0
        %1173 = vmatpush1.bf16.msra.mxu0 0
        %1174 = vmatprep.subr.bf16.mxu0 0
        %1175 = vmatpush1.bf16.msra.mxu0 0
        %1176 = vmatprep.subr.bf16.mxu0 0
        %1177 = vmatpush1.bf16.msra.mxu0 0
        %1178 = vmatprep.subr.bf16.mxu0 0
        %1179 = vmatpush1.bf16.msra.mxu0 0
        %1180 = vmatprep.subr.bf16.mxu0 0
        %1181 = vmatpush1.bf16.msra.mxu0 0
        %1182 = vmatprep.subr.bf16.mxu0 0
        %1183 = vmatpush1.bf16.msra.mxu0 0
        %1184 = vmatprep.subr.bf16.mxu0 0
        %1185 = vmatpush1.bf16.msra.mxu0 0
        %1186 = vmatprep.mubr.bf16.mxu0 0
        %1187 = vmatmul.mubr.bf16.gmra.mrb[0].mxu0 %v1112
        %v1188 = vpop.f32.mrb[0].mxu0
        %v1189 = vadd.f32 0.0, %v1188
        %v1190 = vpop.f32.mrb[0].mxu0
        %v1191 = vadd.f32 0.0, %v1190
        %v1192 = vpop.f32.mrb[0].mxu0
        %v1193 = vpop.f32.mrb[0].mxu0
        %1194 = vdwg.mxu0
        %v1195 = vadd.f32 %v1108, %v1148
        %v1196 = vadd.f32 %v1109, %v1150
        %v1197 = vadd.f32 %v1110, %v1189
        %v1198 = vadd.f32 %v1111, %v1191
        %v1199 = vxor.u32 %v1195, 2147483648
        %v1200 = vmul.f32 %v1199, 1.442695
        %v1201 = vpow.pop %v1200
        %v1202 = vadd.f32 %v1201, 1.0
        %v1203 = vrcp.pop %v1202
        %v1204 = vmul.f32 1.0, %v1203
        %v1205 = vxor.u32 %v1196, 2147483648
        %v1206 = vmul.f32 %v1205, 1.442695
        %v1207 = vpow.pop %v1206
        %v1208 = vadd.f32 %v1207, 1.0
        %v1209 = vrcp.pop %v1208
        %v1210 = vmul.f32 1.0, %v1209
        %v1211 = vtanh.pop %v1197
        %v1212 = vxor.u32 %v1198, 2147483648
        %v1213 = vmul.f32 %v1212, 1.442695
        %v1214 = vpow.pop %v1213
        %v1215 = vadd.f32 %v1214, 1.0
        %v1216 = vrcp.pop %v1215
        %v1217 = vmul.f32 1.0, %v1216
        %v1218 = vmul.f32 %v1210, %v1100
        %v1219 = vmul.f32 %v1204, %v1211
        %v1220 = vadd.f32 %v1218, %v1219
        %v1221 = vtanh.pop %v1220
        %v1222 = vmul.f32 %v1217, %v1221
        %s1223 = scalar_lea.vmem [#allocation5], 24
        %1224 = vst [vmem:[%s1223] sm:$0xff] %v1222
        %s1225 = smul.u32 4, 4
        %s1226 = smul.addr %s1225, 8
        %s1227 = scalar_lea.vmem [#allocation4], %s1226
        %v1228 = vld [vmem:[%s1227] sm:$0xff]
        %v1229 = vld [vmem:[%s1227 + $0x8] sm:$0xff]
        %v1230 = vld [vmem:[%s1227 + $0x10] sm:$0xff]
        %v1231 = vld [vmem:[%s1227 + $0x18] sm:$0xff]
        %v1232 = vpack.c.bf16 %v1222, %v1222
        %1233 = vmatprep.subr.bf16.mxu0 %v691
        %1234 = vmatpush1.bf16.msra.mxu0 %v690
        %1235 = vmatprep.subr.bf16.mxu0 %v695
        %1236 = vmatpush1.bf16.msra.mxu0 %v694
        %1237 = vmatprep.subr.bf16.mxu0 %v699
        %1238 = vmatpush1.bf16.msra.mxu0 %v698
        %1239 = vmatprep.subr.bf16.mxu0 %v703
        %1240 = vmatpush1.bf16.msra.mxu0 %v702
        %1241 = vmatprep.subr.bf16.mxu0 %v707
        %1242 = vmatpush1.bf16.msra.mxu0 %v706
        %1243 = vmatprep.subr.bf16.mxu0 %v711
        %1244 = vmatpush1.bf16.msra.mxu0 %v710
        %1245 = vmatprep.subr.bf16.mxu0 %v715
        %1246 = vmatpush1.bf16.msra.mxu0 %v714
        %1247 = vmatprep.subr.bf16.mxu0 %v719
        %1248 = vmatpush1.bf16.msra.mxu0 %v718
        %1249 = vmatprep.subr.bf16.mxu0 0
        %1250 = vmatpush1.bf16.msra.mxu0 0
        %1251 = vmatprep.subr.bf16.mxu0 0
        %1252 = vmatpush1.bf16.msra.mxu0 0
        %1253 = vmatprep.subr.bf16.mxu0 0
        %1254 = vmatpush1.bf16.msra.mxu0 0
        %1255 = vmatprep.subr.bf16.mxu0 0
        %1256 = vmatpush1.bf16.msra.mxu0 0
        %1257 = vmatprep.subr.bf16.mxu0 0
        %1258 = vmatpush1.bf16.msra.mxu0 0
        %1259 = vmatprep.subr.bf16.mxu0 0
        %1260 = vmatpush1.bf16.msra.mxu0 0
        %1261 = vmatprep.subr.bf16.mxu0 0
        %1262 = vmatpush1.bf16.msra.mxu0 0
        %1263 = vmatprep.subr.bf16.mxu0 0
        %1264 = vmatpush1.bf16.msra.mxu0 0
        %1265 = vmatprep.mubr.bf16.mxu0 0
        %1266 = vmatmul.mubr.bf16.gmra.mrb[0].mxu0 %v1232
        %v1267 = vpop.f32.mrb[0].mxu0
        %v1268 = vadd.f32 0.0, %v1267
        %v1269 = vpop.f32.mrb[0].mxu0
        %v1270 = vadd.f32 0.0, %v1269
        %v1271 = vpop.f32.mrb[0].mxu0
        %v1272 = vpop.f32.mrb[0].mxu0
        %1273 = vdwg.mxu0
        %1274 = vmatprep.subr.bf16.mxu0 %v693
        %1275 = vmatpush1.bf16.msra.mxu0 %v692
        %1276 = vmatprep.subr.bf16.mxu0 %v697
        %1277 = vmatpush1.bf16.msra.mxu0 %v696
        %1278 = vmatprep.subr.bf16.mxu0 %v701
        %1279 = vmatpush1.bf16.msra.mxu0 %v700
        %1280 = vmatprep.subr.bf16.mxu0 %v705
        %1281 = vmatpush1.bf16.msra.mxu0 %v704
        %1282 = vmatprep.subr.bf16.mxu0 %v709
        %1283 = vmatpush1.bf16.msra.mxu0 %v708
        %1284 = vmatprep.subr.bf16.mxu0 %v713
        %1285 = vmatpush1.bf16.msra.mxu0 %v712
        %1286 = vmatprep.subr.bf16.mxu0 %v717
        %1287 = vmatpush1.bf16.msra.mxu0 %v716
        %1288 = vmatprep.subr.bf16.mxu0 %v721
        %1289 = vmatpush1.bf16.msra.mxu0 %v720
        %1290 = vmatprep.subr.bf16.mxu0 0
        %1291 = vmatpush1.bf16.msra.mxu0 0
        %1292 = vmatprep.subr.bf16.mxu0 0
        %1293 = vmatpush1.bf16.msra.mxu0 0
        %1294 = vmatprep.subr.bf16.mxu0 0
        %1295 = vmatpush1.bf16.msra.mxu0 0
        %1296 = vmatprep.subr.bf16.mxu0 0
        %1297 = vmatpush1.bf16.msra.mxu0 0
        %1298 = vmatprep.subr.bf16.mxu0 0
        %1299 = vmatpush1.bf16.msra.mxu0 0
        %1300 = vmatprep.subr.bf16.mxu0 0
        %1301 = vmatpush1.bf16.msra.mxu0 0
        %1302 = vmatprep.subr.bf16.mxu0 0
        %1303 = vmatpush1.bf16.msra.mxu0 0
        %1304 = vmatprep.subr.bf16.mxu0 0
        %1305 = vmatpush1.bf16.msra.mxu0 0
        %1306 = vmatprep.mubr.bf16.mxu0 0
        %1307 = vmatmul.mubr.bf16.gmra.mrb[0].mxu0 %v1232
        %v1308 = vpop.f32.mrb[0].mxu0
        %v1309 = vadd.f32 0.0, %v1308
        %v1310 = vpop.f32.mrb[0].mxu0
        %v1311 = vadd.f32 0.0, %v1310
        %v1312 = vpop.f32.mrb[0].mxu0
        %v1313 = vpop.f32.mrb[0].mxu0
        %1314 = vdwg.mxu0
        %v1315 = vadd.f32 %v1228, %v1268
        %v1316 = vadd.f32 %v1229, %v1270
        %v1317 = vadd.f32 %v1230, %v1309
        %v1318 = vadd.f32 %v1231, %v1311
        %v1319 = vxor.u32 %v1315, 2147483648
        %v1320 = vmul.f32 %v1319, 1.442695
        %v1321 = vpow.pop %v1320
        %v1322 = vadd.f32 %v1321, 1.0
        %v1323 = vrcp.pop %v1322
        %v1324 = vmul.f32 1.0, %v1323
        %v1325 = vxor.u32 %v1316, 2147483648
        %v1326 = vmul.f32 %v1325, 1.442695
        %v1327 = vpow.pop %v1326
        %v1328 = vadd.f32 %v1327, 1.0
        %v1329 = vrcp.pop %v1328
        %v1330 = vmul.f32 1.0, %v1329
        %v1331 = vtanh.pop %v1317
        %v1332 = vxor.u32 %v1318, 2147483648
        %v1333 = vmul.f32 %v1332, 1.442695
        %v1334 = vpow.pop %v1333
        %v1335 = vadd.f32 %v1334, 1.0
        %v1336 = vrcp.pop %v1335
        %v1337 = vmul.f32 1.0, %v1336
        %v1338 = vmul.f32 %v1330, %v1220
        %v1339 = vmul.f32 %v1324, %v1331
        %v1340 = vadd.f32 %v1338, %v1339
        %v1341 = vtanh.pop %v1340
        %v1342 = vmul.f32 %v1337, %v1341
        %s1343 = scalar_lea.vmem [#allocation5], 32
        %1344 = vst [vmem:[%s1343] sm:$0xff] %v1342
        %s1345 = smul.u32 5, 4
        %s1346 = smul.addr %s1345, 8
        %s1347 = scalar_lea.vmem [#allocation4], %s1346
        %v1348 = vld [vmem:[%s1347] sm:$0xff]
        %v1349 = vld [vmem:[%s1347 + $0x8] sm:$0xff]
        %v1350 = vld [vmem:[%s1347 + $0x10] sm:$0xff]
        %v1351 = vld [vmem:[%s1347 + $0x18] sm:$0xff]
        %v1352 = vpack.c.bf16 %v1342, %v1342
        %1353 = vmatprep.subr.bf16.mxu0 %v691
        %1354 = vmatpush1.bf16.msra.mxu0 %v690
        %1355 = vmatprep.subr.bf16.mxu0 %v695
        %1356 = vmatpush1.bf16.msra.mxu0 %v694
        %1357 = vmatprep.subr.bf16.mxu0 %v699
        %1358 = vmatpush1.bf16.msra.mxu0 %v698
        %1359 = vmatprep.subr.bf16.mxu0 %v703
        %1360 = vmatpush1.bf16.msra.mxu0 %v702
        %1361 = vmatprep.subr.bf16.mxu0 %v707
        %1362 = vmatpush1.bf16.msra.mxu0 %v706
        %1363 = vmatprep.subr.bf16.mxu0 %v711
        %1364 = vmatpush1.bf16.msra.mxu0 %v710
        %1365 = vmatprep.subr.bf16.mxu0 %v715
        %1366 = vmatpush1.bf16.msra.mxu0 %v714
        %1367 = vmatprep.subr.bf16.mxu0 %v719
        %1368 = vmatpush1.bf16.msra.mxu0 %v718
        %1369 = vmatprep.subr.bf16.mxu0 0
        %1370 = vmatpush1.bf16.msra.mxu0 0
        %1371 = vmatprep.subr.bf16.mxu0 0
        %1372 = vmatpush1.bf16.msra.mxu0 0
        %1373 = vmatprep.subr.bf16.mxu0 0
        %1374 = vmatpush1.bf16.msra.mxu0 0
        %1375 = vmatprep.subr.bf16.mxu0 0
        %1376 = vmatpush1.bf16.msra.mxu0 0
        %1377 = vmatprep.subr.bf16.mxu0 0
        %1378 = vmatpush1.bf16.msra.mxu0 0
        %1379 = vmatprep.subr.bf16.mxu0 0
        %1380 = vmatpush1.bf16.msra.mxu0 0
        %1381 = vmatprep.subr.bf16.mxu0 0
        %1382 = vmatpush1.bf16.msra.mxu0 0
        %1383 = vmatprep.subr.bf16.mxu0 0
        %1384 = vmatpush1.bf16.msra.mxu0 0
        %1385 = vmatprep.mubr.bf16.mxu0 0
        %1386 = vmatmul.mubr.bf16.gmra.mrb[0].mxu0 %v1352
        %v1387 = vpop.f32.mrb[0].mxu0
        %v1388 = vadd.f32 0.0, %v1387
        %v1389 = vpop.f32.mrb[0].mxu0
        %v1390 = vadd.f32 0.0, %v1389
        %v1391 = vpop.f32.mrb[0].mxu0
        %v1392 = vpop.f32.mrb[0].mxu0
        %1393 = vdwg.mxu0
        %1394 = vmatprep.subr.bf16.mxu0 %v693
        %1395 = vmatpush1.bf16.msra.mxu0 %v692
        %1396 = vmatprep.subr.bf16.mxu0 %v697
        %1397 = vmatpush1.bf16.msra.mxu0 %v696
        %1398 = vmatprep.subr.bf16.mxu0 %v701
        %1399 = vmatpush1.bf16.msra.mxu0 %v700
        %1400 = vmatprep.subr.bf16.mxu0 %v705
        %1401 = vmatpush1.bf16.msra.mxu0 %v704
        %1402 = vmatprep.subr.bf16.mxu0 %v709
        %1403 = vmatpush1.bf16.msra.mxu0 %v708
        %1404 = vmatprep.subr.bf16.mxu0 %v713
        %1405 = vmatpush1.bf16.msra.mxu0 %v712
        %1406 = vmatprep.subr.bf16.mxu0 %v717
        %1407 = vmatpush1.bf16.msra.mxu0 %v716
        %1408 = vmatprep.subr.bf16.mxu0 %v721
        %1409 = vmatpush1.bf16.msra.mxu0 %v720
        %1410 = vmatprep.subr.bf16.mxu0 0
        %1411 = vmatpush1.bf16.msra.mxu0 0
        %1412 = vmatprep.subr.bf16.mxu0 0
        %1413 = vmatpush1.bf16.msra.mxu0 0
        %1414 = vmatprep.subr.bf16.mxu0 0
        %1415 = vmatpush1.bf16.msra.mxu0 0
        %1416 = vmatprep.subr.bf16.mxu0 0
        %1417 = vmatpush1.bf16.msra.mxu0 0
        %1418 = vmatprep.subr.bf16.mxu0 0
        %1419 = vmatpush1.bf16.msra.mxu0 0
        %1420 = vmatprep.subr.bf16.mxu0 0
        %1421 = vmatpush1.bf16.msra.mxu0 0
        %1422 = vmatprep.subr.bf16.mxu0 0
        %1423 = vmatpush1.bf16.msra.mxu0 0
        %1424 = vmatprep.subr.bf16.mxu0 0
        %1425 = vmatpush1.bf16.msra.mxu0 0
        %1426 = vmatprep.mubr.bf16.mxu0 0
        %1427 = vmatmul.mubr.bf16.gmra.mrb[0].mxu0 %v1352
        %v1428 = vpop.f32.mrb[0].mxu0
        %v1429 = vadd.f32 0.0, %v1428
        %v1430 = vpop.f32.mrb[0].mxu0
        %v1431 = vadd.f32 0.0, %v1430
        %v1432 = vpop.f32.mrb[0].mxu0
        %v1433 = vpop.f32.mrb[0].mxu0
        %1434 = vdwg.mxu0
        %v1435 = vadd.f32 %v1348, %v1388
        %v1436 = vadd.f32 %v1349, %v1390
        %v1437 = vadd.f32 %v1350, %v1429
        %v1438 = vadd.f32 %v1351, %v1431
        %v1439 = vxor.u32 %v1435, 2147483648
        %v1440 = vmul.f32 %v1439, 1.442695
        %v1441 = vpow.pop %v1440
        %v1442 = vadd.f32 %v1441, 1.0
        %v1443 = vrcp.pop %v1442
        %v1444 = vmul.f32 1.0, %v1443
        %v1445 = vxor.u32 %v1436, 2147483648
        %v1446 = vmul.f32 %v1445, 1.442695
        %v1447 = vpow.pop %v1446
        %v1448 = vadd.f32 %v1447, 1.0
        %v1449 = vrcp.pop %v1448
        %v1450 = vmul.f32 1.0, %v1449
        %v1451 = vtanh.pop %v1437
        %v1452 = vxor.u32 %v1438, 2147483648
        %v1453 = vmul.f32 %v1452, 1.442695
        %v1454 = vpow.pop %v1453
        %v1455 = vadd.f32 %v1454, 1.0
        %v1456 = vrcp.pop %v1455
        %v1457 = vmul.f32 1.0, %v1456
        %v1458 = vmul.f32 %v1450, %v1340
        %v1459 = vmul.f32 %v1444, %v1451
        %v1460 = vadd.f32 %v1458, %v1459
        %v1461 = vtanh.pop %v1460
        %v1462 = vmul.f32 %v1457, %v1461
        %s1463 = scalar_lea.vmem [#allocation5], 40
        %1464 = vst [vmem:[%s1463] sm:$0xff] %v1462
        %s1465 = smul.u32 6, 4
        %s1466 = smul.addr %s1465, 8
        %s1467 = scalar_lea.vmem [#allocation4], %s1466
        %v1468 = vld [vmem:[%s1467] sm:$0xff]
        %v1469 = vld [vmem:[%s1467 + $0x8] sm:$0xff]
        %v1470 = vld [vmem:[%s1467 + $0x10] sm:$0xff]
        %v1471 = vld [vmem:[%s1467 + $0x18] sm:$0xff]
        %v1472 = vpack.c.bf16 %v1462, %v1462
        %1473 = vmatprep.subr.bf16.mxu0 %v691
        %1474 = vmatpush1.bf16.msra.mxu0 %v690
        %1475 = vmatprep.subr.bf16.mxu0 %v695
        %1476 = vmatpush1.bf16.msra.mxu0 %v694
        %1477 = vmatprep.subr.bf16.mxu0 %v699
        %1478 = vmatpush1.bf16.msra.mxu0 %v698
        %1479 = vmatprep.subr.bf16.mxu0 %v703
        %1480 = vmatpush1.bf16.msra.mxu0 %v702
        %1481 = vmatprep.subr.bf16.mxu0 %v707
        %1482 = vmatpush1.bf16.msra.mxu0 %v706
        %1483 = vmatprep.subr.bf16.mxu0 %v711
        %1484 = vmatpush1.bf16.msra.mxu0 %v710
        %1485 = vmatprep.subr.bf16.mxu0 %v715
        %1486 = vmatpush1.bf16.msra.mxu0 %v714
        %1487 = vmatprep.subr.bf16.mxu0 %v719
        %1488 = vmatpush1.bf16.msra.mxu0 %v718
        %1489 = vmatprep.subr.bf16.mxu0 0
        %1490 = vmatpush1.bf16.msra.mxu0 0
        %1491 = vmatprep.subr.bf16.mxu0 0
        %1492 = vmatpush1.bf16.msra.mxu0 0
        %1493 = vmatprep.subr.bf16.mxu0 0
        %1494 = vmatpush1.bf16.msra.mxu0 0
        %1495 = vmatprep.subr.bf16.mxu0 0
        %1496 = vmatpush1.bf16.msra.mxu0 0
        %1497 = vmatprep.subr.bf16.mxu0 0
        %1498 = vmatpush1.bf16.msra.mxu0 0
        %1499 = vmatprep.subr.bf16.mxu0 0
        %1500 = vmatpush1.bf16.msra.mxu0 0
        %1501 = vmatprep.subr.bf16.mxu0 0
        %1502 = vmatpush1.bf16.msra.mxu0 0
        %1503 = vmatprep.subr.bf16.mxu0 0
        %1504 = vmatpush1.bf16.msra.mxu0 0
        %1505 = vmatprep.mubr.bf16.mxu0 0
        %1506 = vmatmul.mubr.bf16.gmra.mrb[0].mxu0 %v1472
        %v1507 = vpop.f32.mrb[0].mxu0
        %v1508 = vadd.f32 0.0, %v1507
        %v1509 = vpop.f32.mrb[0].mxu0
        %v1510 = vadd.f32 0.0, %v1509
        %v1511 = vpop.f32.mrb[0].mxu0
        %v1512 = vpop.f32.mrb[0].mxu0
        %1513 = vdwg.mxu0
        %1514 = vmatprep.subr.bf16.mxu0 %v693
        %1515 = vmatpush1.bf16.msra.mxu0 %v692
        %1516 = vmatprep.subr.bf16.mxu0 %v697
        %1517 = vmatpush1.bf16.msra.mxu0 %v696
        %1518 = vmatprep.subr.bf16.mxu0 %v701
        %1519 = vmatpush1.bf16.msra.mxu0 %v700
        %1520 = vmatprep.subr.bf16.mxu0 %v705
        %1521 = vmatpush1.bf16.msra.mxu0 %v704
        %1522 = vmatprep.subr.bf16.mxu0 %v709
        %1523 = vmatpush1.bf16.msra.mxu0 %v708
        %1524 = vmatprep.subr.bf16.mxu0 %v713
        %1525 = vmatpush1.bf16.msra.mxu0 %v712
        %1526 = vmatprep.subr.bf16.mxu0 %v717
        %1527 = vmatpush1.bf16.msra.mxu0 %v716
        %1528 = vmatprep.subr.bf16.mxu0 %v721
        %1529 = vmatpush1.bf16.msra.mxu0 %v720
        %1530 = vmatprep.subr.bf16.mxu0 0
        %1531 = vmatpush1.bf16.msra.mxu0 0
        %1532 = vmatprep.subr.bf16.mxu0 0
        %1533 = vmatpush1.bf16.msra.mxu0 0
        %1534 = vmatprep.subr.bf16.mxu0 0
        %1535 = vmatpush1.bf16.msra.mxu0 0
        %1536 = vmatprep.subr.bf16.mxu0 0
        %1537 = vmatpush1.bf16.msra.mxu0 0
        %1538 = vmatprep.subr.bf16.mxu0 0
        %1539 = vmatpush1.bf16.msra.mxu0 0
        %1540 = vmatprep.subr.bf16.mxu0 0
        %1541 = vmatpush1.bf16.msra.mxu0 0
        %1542 = vmatprep.subr.bf16.mxu0 0
        %1543 = vmatpush1.bf16.msra.mxu0 0
        %1544 = vmatprep.subr.bf16.mxu0 0
        %1545 = vmatpush1.bf16.msra.mxu0 0
        %1546 = vmatprep.mubr.bf16.mxu0 0
        %1547 = vmatmul.mubr.bf16.gmra.mrb[0].mxu0 %v1472
        %v1548 = vpop.f32.mrb[0].mxu0
        %v1549 = vadd.f32 0.0, %v1548
        %v1550 = vpop.f32.mrb[0].mxu0
        %v1551 = vadd.f32 0.0, %v1550
        %v1552 = vpop.f32.mrb[0].mxu0
        %v1553 = vpop.f32.mrb[0].mxu0
        %1554 = vdwg.mxu0
        %v1555 = vadd.f32 %v1468, %v1508
        %v1556 = vadd.f32 %v1469, %v1510
        %v1557 = vadd.f32 %v1470, %v1549
        %v1558 = vadd.f32 %v1471, %v1551
        %v1559 = vxor.u32 %v1555, 2147483648
        %v1560 = vmul.f32 %v1559, 1.442695
        %v1561 = vpow.pop %v1560
        %v1562 = vadd.f32 %v1561, 1.0
        %v1563 = vrcp.pop %v1562
        %v1564 = vmul.f32 1.0, %v1563
        %v1565 = vxor.u32 %v1556, 2147483648
        %v1566 = vmul.f32 %v1565, 1.442695
        %v1567 = vpow.pop %v1566
        %v1568 = vadd.f32 %v1567, 1.0
        %v1569 = vrcp.pop %v1568
        %v1570 = vmul.f32 1.0, %v1569
        %v1571 = vtanh.pop %v1557
        %v1572 = vxor.u32 %v1558, 2147483648
        %v1573 = vmul.f32 %v1572, 1.442695
        %v1574 = vpow.pop %v1573
        %v1575 = vadd.f32 %v1574, 1.0
        %v1576 = vrcp.pop %v1575
        %v1577 = vmul.f32 1.0, %v1576
        %v1578 = vmul.f32 %v1570, %v1460
        %v1579 = vmul.f32 %v1564, %v1571
        %v1580 = vadd.f32 %v1578, %v1579
        %v1581 = vtanh.pop %v1580
        %v1582 = vmul.f32 %v1577, %v1581
        %s1583 = scalar_lea.vmem [#allocation5], 48
        %1584 = vst [vmem:[%s1583] sm:$0xff] %v1582
        %s1585 = smul.u32 7, 4
        %s1586 = smul.addr %s1585, 8
        %s1587 = scalar_lea.vmem [#allocation4], %s1586
        %v1588 = vld [vmem:[%s1587] sm:$0xff]
        %v1589 = vld [vmem:[%s1587 + $0x8] sm:$0xff]
        %v1590 = vld [vmem:[%s1587 + $0x10] sm:$0xff]
        %v1591 = vld [vmem:[%s1587 + $0x18] sm:$0xff]
        %v1592 = vpack.c.bf16 %v1582, %v1582
        %1593 = vmatprep.subr.bf16.mxu0 %v691
        %1594 = vmatpush1.bf16.msra.mxu0 %v690
        %1595 = vmatprep.subr.bf16.mxu0 %v695
        %1596 = vmatpush1.bf16.msra.mxu0 %v694
        %1597 = vmatprep.subr.bf16.mxu0 %v699
        %1598 = vmatpush1.bf16.msra.mxu0 %v698
        %1599 = vmatprep.subr.bf16.mxu0 %v703
        %1600 = vmatpush1.bf16.msra.mxu0 %v702
        %1601 = vmatprep.subr.bf16.mxu0 %v707
        %1602 = vmatpush1.bf16.msra.mxu0 %v706
        %1603 = vmatprep.subr.bf16.mxu0 %v711
        %1604 = vmatpush1.bf16.msra.mxu0 %v710
        %1605 = vmatprep.subr.bf16.mxu0 %v715
        %1606 = vmatpush1.bf16.msra.mxu0 %v714
        %1607 = vmatprep.subr.bf16.mxu0 %v719
        %1608 = vmatpush1.bf16.msra.mxu0 %v718
        %1609 = vmatprep.subr.bf16.mxu0 0
        %1610 = vmatpush1.bf16.msra.mxu0 0
        %1611 = vmatprep.subr.bf16.mxu0 0
        %1612 = vmatpush1.bf16.msra.mxu0 0
        %1613 = vmatprep.subr.bf16.mxu0 0
        %1614 = vmatpush1.bf16.msra.mxu0 0
        %1615 = vmatprep.subr.bf16.mxu0 0
        %1616 = vmatpush1.bf16.msra.mxu0 0
        %1617 = vmatprep.subr.bf16.mxu0 0
        %1618 = vmatpush1.bf16.msra.mxu0 0
        %1619 = vmatprep.subr.bf16.mxu0 0
        %1620 = vmatpush1.bf16.msra.mxu0 0
        %1621 = vmatprep.subr.bf16.mxu0 0
        %1622 = vmatpush1.bf16.msra.mxu0 0
        %1623 = vmatprep.subr.bf16.mxu0 0
        %1624 = vmatpush1.bf16.msra.mxu0 0
        %1625 = vmatprep.mubr.bf16.mxu0 0
        %1626 = vmatmul.mubr.bf16.gmra.mrb[0].mxu0 %v1592
        %v1627 = vpop.f32.mrb[0].mxu0
        %v1628 = vadd.f32 0.0, %v1627
        %v1629 = vpop.f32.mrb[0].mxu0
        %v1630 = vadd.f32 0.0, %v1629
        %v1631 = vpop.f32.mrb[0].mxu0
        %v1632 = vpop.f32.mrb[0].mxu0
        %1633 = vdwg.mxu0
        %1634 = vmatprep.subr.bf16.mxu0 %v693
        %1635 = vmatpush1.bf16.msra.mxu0 %v692
        %1636 = vmatprep.subr.bf16.mxu0 %v697
        %1637 = vmatpush1.bf16.msra.mxu0 %v696
        %1638 = vmatprep.subr.bf16.mxu0 %v701
        %1639 = vmatpush1.bf16.msra.mxu0 %v700
        %1640 = vmatprep.subr.bf16.mxu0 %v705
        %1641 = vmatpush1.bf16.msra.mxu0 %v704
        %1642 = vmatprep.subr.bf16.mxu0 %v709
        %1643 = vmatpush1.bf16.msra.mxu0 %v708
        %1644 = vmatprep.subr.bf16.mxu0 %v713
        %1645 = vmatpush1.bf16.msra.mxu0 %v712
        %1646 = vmatprep.subr.bf16.mxu0 %v717
        %1647 = vmatpush1.bf16.msra.mxu0 %v716
        %1648 = vmatprep.subr.bf16.mxu0 %v721
        %1649 = vmatpush1.bf16.msra.mxu0 %v720
        %1650 = vmatprep.subr.bf16.mxu0 0
        %1651 = vmatpush1.bf16.msra.mxu0 0
        %1652 = vmatprep.subr.bf16.mxu0 0
        %1653 = vmatpush1.bf16.msra.mxu0 0
        %1654 = vmatprep.subr.bf16.mxu0 0
        %1655 = vmatpush1.bf16.msra.mxu0 0
        %1656 = vmatprep.subr.bf16.mxu0 0
        %1657 = vmatpush1.bf16.msra.mxu0 0
        %1658 = vmatprep.subr.bf16.mxu0 0
        %1659 = vmatpush1.bf16.msra.mxu0 0
        %1660 = vmatprep.subr.bf16.mxu0 0
        %1661 = vmatpush1.bf16.msra.mxu0 0
        %1662 = vmatprep.subr.bf16.mxu0 0
        %1663 = vmatpush1.bf16.msra.mxu0 0
        %1664 = vmatprep.subr.bf16.mxu0 0
        %1665 = vmatpush1.bf16.msra.mxu0 0
        %1666 = vmatprep.mubr.bf16.mxu0 0
        %1667 = vmatmul.mubr.bf16.gmra.mrb[0].mxu0 %v1592
        %v1668 = vpop.f32.mrb[0].mxu0
        %v1669 = vadd.f32 0.0, %v1668
        %v1670 = vpop.f32.mrb[0].mxu0
        %v1671 = vadd.f32 0.0, %v1670
        %v1672 = vpop.f32.mrb[0].mxu0
        %v1673 = vpop.f32.mrb[0].mxu0
        %1674 = vdwg.mxu0
        %v1675 = vadd.f32 %v1588, %v1628
        %v1676 = vadd.f32 %v1589, %v1630
        %v1677 = vadd.f32 %v1590, %v1669
        %v1678 = vadd.f32 %v1591, %v1671
        %v1679 = vxor.u32 %v1675, 2147483648
        %v1680 = vmul.f32 %v1679, 1.442695
        %v1681 = vpow.pop %v1680
        %v1682 = vadd.f32 %v1681, 1.0
        %v1683 = vrcp.pop %v1682
        %v1684 = vmul.f32 1.0, %v1683
        %v1685 = vxor.u32 %v1676, 2147483648
        %v1686 = vmul.f32 %v1685, 1.442695
        %v1687 = vpow.pop %v1686
        %v1688 = vadd.f32 %v1687, 1.0
        %v1689 = vrcp.pop %v1688
        %v1690 = vmul.f32 1.0, %v1689
        %v1691 = vtanh.pop %v1677
        %v1692 = vxor.u32 %v1678, 2147483648
        %v1693 = vmul.f32 %v1692, 1.442695
        %v1694 = vpow.pop %v1693
        %v1695 = vadd.f32 %v1694, 1.0
        %v1696 = vrcp.pop %v1695
        %v1697 = vmul.f32 1.0, %v1696
        %v1698 = vmul.f32 %v1690, %v1580
        %v1699 = vmul.f32 %v1684, %v1691
        %v1700 = vadd.f32 %v1698, %v1699
        %v1701 = vtanh.pop %v1700
        %v1702 = vmul.f32 %v1697, %v1701
        %s1703 = scalar_lea.vmem [#allocation5], 56
        %1704 = vst [vmem:[%s1703] sm:$0xff] %v1702
        %1705 = vst [vmem:[#allocation2] sm:$0xff] %v1702
        %1706 = vst [vmem:[#allocation3] sm:$0xff] %v1700
        %v1707 = vld [vmem:[#allocation5] sm:$0xff]
        %v1708 = vld [vmem:[#allocation5 + $0x8] sm:$0xff]
        %v1709 = vld [vmem:[#allocation5 + $0x10] sm:$0xff]
        %v1710 = vld [vmem:[#allocation5 + $0x18] sm:$0xff]
        %v1711 = vld [vmem:[#allocation5 + $0x20] sm:$0xff]
        %v1712 = vld [vmem:[#allocation5 + $0x28] sm:$0xff]
        %v1713 = vld [vmem:[#allocation5 + $0x30] sm:$0xff]
        %v1714 = vld [vmem:[#allocation5 + $0x38] sm:$0xff]
        %v1715 = vpack.c.bf16 %v1708, %v1707
        %v1716 = vpack.c.bf16 %v1710, %v1709
        %v1717 = vpack.c.bf16 %v1712, %v1711
        %v1718 = vpack.c.bf16 %v1714, %v1713
        %v1719 = vld [vmem:[%s4] sm:$0xf]
        %v1720 = vld [vmem:[%s4 + $0x4] sm:$0xf]
        %v1721 = vld [vmem:[%s4 + $0x8] sm:$0xf]
        %v1722 = vld [vmem:[%s4 + $0xc] sm:$0xf]
        %v1723 = vld [vmem:[%s4 + $0x10] sm:$0xf]
        %v1724 = vld [vmem:[%s4 + $0x14] sm:$0xf]
        %v1725 = vld [vmem:[%s4 + $0x18] sm:$0xf]
        %v1726 = vld [vmem:[%s4 + $0x1c] sm:$0xf]
        %v1727 = vld [vmem:[%s4 + $0x20] sm:$0xf]
        %v1728 = vld [vmem:[%s4 + $0x24] sm:$0xf]
        %v1729 = vld [vmem:[%s4 + $0x28] sm:$0xf]
        %v1730 = vld [vmem:[%s4 + $0x2c] sm:$0xf]
        %v1731 = vld [vmem:[%s4 + $0x30] sm:$0xf]
        %v1732 = vld [vmem:[%s4 + $0x34] sm:$0xf]
        %v1733 = vld [vmem:[%s4 + $0x38] sm:$0xf]
        %v1734 = vld [vmem:[%s4 + $0x3c] sm:$0xf]
        %v1735 = vld [vmem:[%s5] sm:$0x1]
        %v1737 = vlaneseq
        %v1738 = vshrl.u32 %v1737, 7
        %v1739 = vsub.s32 0, %v1738
        %v1740 = vrot.slane %v1735, %v1739
        %v1758 = vunpack.c.l.b16 %v1719
        %v1759 = vunpack.c.l.b16 %v1720
        %v1760 = vunpack.c.l.b16 %v1721
        %v1761 = vunpack.c.l.b16 %v1722
        %v1762 = vunpack.c.l.b16 %v1723
        %v1763 = vunpack.c.l.b16 %v1724
        %v1764 = vunpack.c.l.b16 %v1725
        %v1765 = vunpack.c.l.b16 %v1726
        %v1766 = vunpack.c.l.b16 %v1727
        %v1767 = vunpack.c.l.b16 %v1728
        %v1768 = vunpack.c.l.b16 %v1729
        %v1769 = vunpack.c.l.b16 %v1730
        %v1770 = vunpack.c.l.b16 %v1731
        %v1771 = vunpack.c.l.b16 %v1732
        %v1772 = vunpack.c.l.b16 %v1733
        %v1773 = vunpack.c.l.b16 %v1734
        %v1774 = vpack.c.b16 %v1759, %v1758
        %v1775 = vpack.c.b16 %v1761, %v1760
        %v1776 = vpack.c.b16 %v1763, %v1762
        %v1777 = vpack.c.b16 %v1765, %v1764
        %v1778 = vpack.c.b16 %v1767, %v1766
        %v1779 = vpack.c.b16 %v1769, %v1768
        %v1780 = vpack.c.b16 %v1771, %v1770
        %v1781 = vpack.c.b16 %v1773, %v1772
        %1790 = vmatprep.subr.bf16.mxu0 0
        %1791 = vmatpush1.bf16.msra.mxu0 %v1774
        %1792 = vmatprep.subr.bf16.mxu0 0
        %1793 = vmatpush1.bf16.msra.mxu0 %v1775
        %1794 = vmatprep.subr.bf16.mxu0 0
        %1795 = vmatpush1.bf16.msra.mxu0 %v1776
        %1796 = vmatprep.subr.bf16.mxu0 0
        %1797 = vmatpush1.bf16.msra.mxu0 %v1777
        %1798 = vmatprep.subr.bf16.mxu0 0
        %1799 = vmatpush1.bf16.msra.mxu0 %v1778
        %1800 = vmatprep.subr.bf16.mxu0 0
        %1801 = vmatpush1.bf16.msra.mxu0 %v1779
        %1802 = vmatprep.subr.bf16.mxu0 0
        %1803 = vmatpush1.bf16.msra.mxu0 %v1780
        %1804 = vmatprep.subr.bf16.mxu0 0
        %1805 = vmatpush1.bf16.msra.mxu0 %v1781
        %1806 = vmatprep.subr.bf16.mxu0 0
        %1807 = vmatpush1.bf16.msra.mxu0 0
        %1808 = vmatprep.subr.bf16.mxu0 0
        %1809 = vmatpush1.bf16.msra.mxu0 0
        %1810 = vmatprep.subr.bf16.mxu0 0
        %1811 = vmatpush1.bf16.msra.mxu0 0
        %1812 = vmatprep.subr.bf16.mxu0 0
        %1813 = vmatpush1.bf16.msra.mxu0 0
        %1814 = vmatprep.subr.bf16.mxu0 0
        %1815 = vmatpush1.bf16.msra.mxu0 0
        %1816 = vmatprep.subr.bf16.mxu0 0
        %1817 = vmatpush1.bf16.msra.mxu0 0
        %1818 = vmatprep.subr.bf16.mxu0 0
        %1819 = vmatpush1.bf16.msra.mxu0 0
        %1820 = vmatprep.subr.bf16.mxu0 0
        %1821 = vmatpush1.bf16.msra.mxu0 0
        %1822 = vmatprep.mubr.bf16.mxu0 0
        %1823 = vmatmul.mubr.bf16.gmra.mrb[0].mxu0 %v1715
        %v1824 = vpop.f32.mrb[0].mxu0
        %v1825 = vadd.f32 %v1740, %v1824
        %v1826 = vpop.f32.mrb[0].mxu0
        %v1827 = vpop.f32.mrb[0].mxu0
        %v1828 = vadd.f32 %v1740, %v1827
        %v1829 = vpop.f32.mrb[0].mxu0
        %1830 = vmatprep.mubr.bf16.mxu0 0
        %1831 = vmatmul.mubr.bf16.gmra.mrb[0].mxu0 %v1716
        %v1832 = vpop.f32.mrb[0].mxu0
        %v1833 = vadd.f32 %v1740, %v1832
        %v1834 = vpop.f32.mrb[0].mxu0
        %v1835 = vpop.f32.mrb[0].mxu0
        %v1836 = vadd.f32 %v1740, %v1835
        %v1837 = vpop.f32.mrb[0].mxu0
        %1838 = vmatprep.mubr.bf16.mxu0 0
        %1839 = vmatmul.mubr.bf16.gmra.mrb[0].mxu0 %v1717
        %v1840 = vpop.f32.mrb[0].mxu0
        %v1841 = vadd.f32 %v1740, %v1840
        %v1842 = vpop.f32.mrb[0].mxu0
        %v1843 = vpop.f32.mrb[0].mxu0
        %v1844 = vadd.f32 %v1740, %v1843
        %v1845 = vpop.f32.mrb[0].mxu0
        %1846 = vmatprep.mubr.bf16.mxu0 0
        %1847 = vmatmul.mubr.bf16.gmra.mrb[0].mxu0 %v1718
        %v1848 = vpop.f32.mrb[0].mxu0
        %v1849 = vadd.f32 %v1740, %v1848
        %v1850 = vpop.f32.mrb[0].mxu0
        %v1851 = vpop.f32.mrb[0].mxu0
        %v1852 = vadd.f32 %v1740, %v1851
        %v1853 = vpop.f32.mrb[0].mxu0
        %1854 = vdwg.mxu0
        %1855 = vst [vmem:[%s274] sm:$0xff] %v1825
        %1856 = vst [vmem:[%s274 + $0x8] sm:$0xff] %v1828
        %1857 = vst [vmem:[%s274 + $0x10] sm:$0xff] %v1833
        %1858 = vst [vmem:[%s274 + $0x18] sm:$0xff] %v1836
        %1859 = vst [vmem:[%s274 + $0x20] sm:$0xff] %v1841
        %1860 = vst [vmem:[%s274 + $0x28] sm:$0xff] %v1844
        %1861 = vst [vmem:[%s274 + $0x30] sm:$0xff] %v1849
        %1862 = vst [vmem:[%s274 + $0x38] sm:$0xff] %v1852
        %s1863 = sand.u32 %s161, 1
        %s1864 = scalar_lea.sflag [#allocation8], %s1863
        %s1865 = sand.u32 %s161, 1
        %s1866 = smul.addr %s1865, 64
        %s1867 = scalar_lea.vmem [#allocation11], %s1866
        // Predicated region
        $region57: #{tpu_custom_call.1} parent=43 // pred_check
          %p1868 = pneg %p171
        $region58: #{tpu_custom_call.1} parent=43 // pred_check_branch
          %1870 = sbr.rel (%p1868) target = $region60
        $region59: #{tpu_custom_call.1} parent=43 // pred_region
          %s1872 = ssub.s32 1024, 1024
          %1873 = vsyncadd %s1864, %s1872
          %s1874 = smul.addr %s22, 8
          %s1875 = smul.addr %s1874, 128
          %s1876 = scalar_lea.hbm %s6, %s1875
          %s1877 = sshll.u32 %s1867, 4
          %s1878 = int_to_ptr.vmem [resolvable:$true] %s1877
          %1883 = dma.vmem_to_hbm [thread:$0]  %s1878, 1024, %s1876, %s1864, 128, 128, 8
        $region60: #{tpu_custom_call.1} parent=43 // pred_fallthru
          _
      $region44: #{tpu_custom_call.1} parent=5 // pred_fallthru
        _
      %p1884 = scmp.le.s32.totalorder 2, %s17
      // Predicated region
      $region61: #{tpu_custom_call.1} parent=5 // pred_check
        %p1885 = pneg %p1884
      $region62: #{tpu_custom_call.1} parent=5 // pred_check_branch
        %1887 = sbr.rel (%p1885) target = $region64
      $region63: #{tpu_custom_call.1} parent=5 // pred_region
        %s1888 = ssub.s32 %s17, 2
        // Predicated region
        $region65: #{tpu_custom_call.1} parent=63 // pred_check
          %p1889 = pneg %p177
        $region66: #{tpu_custom_call.1} parent=63 // pred_check_branch
          %1891 = sbr.rel (%p1889) target = $region68
        $region67: #{tpu_custom_call.1} parent=63 // pred_region
          %s1892 = sand.u32 %s162, 1
          %s1893 = scalar_lea.sflag [#allocation8], %s1892
          %s1894 = sand.u32 %s162, 1
          %s1895 = smul.addr %s1894, 64
          %s1896 = scalar_lea.vmem [#allocation11], %s1895
          %1897 = dma.done %s1893, 1024
        $region68: #{tpu_custom_call.1} parent=63 // pred_fallthru
          _
      $region64: #{tpu_custom_call.1} parent=5 // pred_fallthru
        _
    $region6: #{tpu_custom_call.1} parent=1 // loop_footer
      %s21 = sadd.s32 1, %s17
    $region7: #{tpu_custom_call.1} parent=1 // loop_footer_branch
      %16 = sbr.rel target = $region3
    $region8: #{tpu_custom_call.1} parent=1 // loop_exit
      _
    %1898 = vsyncpa [#allocation7], 1
    %s1899 = scalar_lea.sflag [#allocation7], 1
    %1900 = vsyncpa %s1899, 1
    %1901 = vsyncpa [#allocation10], 1
    %1902 = vsyncpa [#allocation8], 1
    %s1903 = scalar_lea.sflag [#allocation8], 1
    %1904 = vsyncpa %s1903, 1

</llo_original>
